<compile_context>
chip_gen: v6e
topology: v6e:2x2x1
jax: 0.10.0
libtpu: 0.0.40
codegen_flags: <defaults>
</compile_context>

<pallas_src>
import functools

import jax
import jax.numpy as jnp
import numpy as np
from jax import lax
from jax.experimental import pallas as pl
from jax.experimental.pallas import tpu as pltpu

EPS = 1e-12  # F.normalize default eps


def sage_conv_kernel(feat_ref, col_ref, w_ref, b_ref,   # inputs  (VMEM)
                     out_ref,                            # output  (resident acc)
                     cnt_ref,                            # scratch (VMEM)
                     *, num_edges, edge_tile, res_size):
    e_blk = pl.program_id(0)
    base = e_blk * edge_tile

    # ---- init resident accumulators at the first edge tile ----
    @pl.when(e_blk == 0)
    def _():
        out_ref[...] = jnp.zeros_like(out_ref)
        cnt_ref[...] = jnp.zeros_like(cnt_ref)

    # ---- 1. per-edge L2 normalize of concat([x[row], edge_attr]) ----
    # feat_ref tile is [C_in+C_edge, TE] (edges ride the 128-lane axis).
    feat = feat_ref[...]
    sq = jnp.sum(feat * feat, axis=0, keepdims=True)           # [1, TE]
    inv = lax.rsqrt(jnp.maximum(sq, EPS * EPS))                 # EUP
    feat_n = feat * inv

    # ---- 2. fused Linear BEFORE the scatter (mean is linear; bias later) ----
    # W is [C_out, C_in+C_edge]  ->  h_t is [C_out, TE]
    h_t = jnp.dot(w_ref[...], feat_n, preferred_element_type=jnp.float32)

    # ---- 3. one-hot segment-sum on the MXU (replaces the scatter RMW loop) --
    col = col_ref[...]                                          # [TE, 1] int32
    node_ids = lax.broadcasted_iota(jnp.int32, (edge_tile, res_size), 1)
    edge_ids = base + lax.broadcasted_iota(jnp.int32, (edge_tile, 1), 0)
    onehot = ((node_ids == col) & (edge_ids < num_edges)).astype(jnp.float32)

    out_ref[...] += jnp.dot(h_t, onehot, preferred_element_type=jnp.float32)
    cnt_ref[...] += jnp.sum(onehot, axis=0, keepdims=True)      # [1, R]

    # ---- 4. finalize: mean (deferred inv_count), bias, final F.normalize ----
    @pl.when(e_blk == pl.num_programs(0) - 1)
    def _():
        y = (out_ref[...] * pl.reciprocal(jnp.maximum(cnt_ref[...], 1.0))
             + b_ref[...])                                      # [C_out, R]
        ysq = jnp.sum(y * y, axis=0, keepdims=True)             # [1, R]
        out_ref[...] = (y * lax.rsqrt(jnp.maximum(ysq, EPS * EPS))
                        ).astype(out_ref.dtype)


@functools.partial(jax.jit, static_argnames=("res_size", "edge_tile"))
def sage_conv_with_edges(x, res_size, edge_index, edge_attr, weight, bias,
                         edge_tile=512):
    """Pallas implementation of SAGEConvWithEdges.forward."""
    N, C_in = x.shape
    E, C_edge = edge_attr.shape
    C_out = weight.shape[0]
    C_tot = C_in + C_edge

    num_tiles = pl.cdiv(E, edge_tile)
    E_pad = num_tiles * edge_tile

    row = edge_index[0].astype(jnp.int32)
    col = edge_index[1].astype(jnp.int32)

    # Pre-gather + concat on the XLA side, then transpose so edges ride the
    # 128-lane axis (lane-dense tiles; only ~16 B/edge of extra HBM traffic).
    feat = jnp.concatenate(
        [x.astype(jnp.float32)[row], edge_attr.astype(jnp.float32)], axis=1)
    feat_t = jnp.zeros((C_tot, E_pad), jnp.float32).at[:, :E].set(feat.T)
    col_pad = jnp.zeros((E_pad, 1), jnp.int32).at[:E, 0].set(col)

    w = weight.astype(jnp.float32)                    # [C_out, C_tot]
    b = bias.reshape(C_out, 1).astype(jnp.float32)    # [C_out, 1]

    kernel = functools.partial(sage_conv_kernel, num_edges=E,
                               edge_tile=edge_tile, res_size=res_size)

    grid_spec = pltpu.PrefetchScalarGridSpec(
        num_scalar_prefetch=0,
        grid=(num_tiles,),
        in_specs=[
            pl.BlockSpec((C_tot, edge_tile), lambda e: (0, e)),   # features^T
            pl.BlockSpec((edge_tile, 1), lambda e: (e, 0)),       # col indices
            pl.BlockSpec((C_out, C_tot), lambda e: (0, 0)),       # W (resident)
            pl.BlockSpec((C_out, 1), lambda e: (0, 0)),           # bias
        ],
        out_specs=pl.BlockSpec((C_out, res_size), lambda e: (0, 0)),
        scratch_shapes=[
            pltpu.VMEM((1, res_size), jnp.float32),               # counts
        ],
    )

    flops = (2 * E_pad * C_tot * C_out            # fused linear (MXU)
             + 2 * E_pad * res_size * C_out       # one-hot segment matmul (MXU)
             + 2 * E_pad * res_size               # one-hot build + count reduce
             + 4 * E_pad * C_tot                  # normalize + scaling
             + 6 * res_size * C_out)              # finalize
    transcendentals = E_pad + res_size
    bytes_accessed = 4 * (E_pad * C_tot + E_pad
                          + C_out * C_tot + C_out
                          + res_size * C_out)

    out_t = pl.pallas_call(
        kernel,
        out_shape=jax.ShapeDtypeStruct((C_out, res_size), jnp.float32),
        grid_spec=grid_spec,
        compiler_params=pltpu.CompilerParams(
            dimension_semantics=("arbitrary",),      # edge axis = accumulation
            vmem_limit_bytes=32 * 1024 * 1024,       # safe on v5e/v6e/v7x
        ),
        cost_estimate=pl.CostEstimate(flops=flops,
                                      transcendentals=transcendentals,
                                      bytes_accessed=bytes_accessed),
    )(feat_t, col_pad, w, b)

    return out_t.T                                    # back to [res_size, C_out]


def reference(x, res_size, edge_index, edge_attr, weight, bias):
    """Pure-JAX reference matching the PyTorch forward."""
    row, col = edge_index
    x_row = x[row]
    ea = jnp.concatenate([x_row, edge_attr], axis=1)
    ea = ea / jnp.maximum(jnp.linalg.norm(ea, axis=1, keepdims=True), EPS)
    ssum = jnp.zeros((res_size, ea.shape[1]), jnp.float32).at[col].add(ea)
    cnt = jnp.zeros((res_size, 1), jnp.float32).at[col].add(1.0)
    mean = ssum / jnp.maximum(cnt, 1.0)
    y = mean @ weight.T + bias
    return y / jnp.maximum(jnp.linalg.norm(y, axis=1, keepdims=True), EPS)


if __name__ == "__main__":
    # Small synthetic problem: N nodes, E edges.
    N, E = 16, 32
    in_channels, in_edge_channels, out_channels = 4, 4, 8
    res_size = N

    key = jax.random.PRNGKey(0)
    kx, ke, kr, kc, kw, kb = jax.random.split(key, 6)

    x = jax.random.normal(kx, (N, in_channels), dtype=jnp.float32)
    edge_attr = jax.random.normal(ke, (E, in_edge_channels), dtype=jnp.float32)
    row = jax.random.randint(kr, (E,), 0, N, dtype=jnp.int32)
    col = jax.random.randint(kc, (E,), 0, N, dtype=jnp.int32)
    edge_index = jnp.stack([row, col], axis=0)           # [2, E]

    # Deterministic Linear(in_channels + in_edge_channels, out_channels) init
    # (uniform in [-1/sqrt(fan_in), 1/sqrt(fan_in)], like nn.Linear.reset_parameters).
    fan_in = in_channels + in_edge_channels
    bound = 1.0 / np.sqrt(fan_in)
    weight = jax.random.uniform(kw, (out_channels, fan_in),
                                minval=-bound, maxval=bound, dtype=jnp.float32)
    bias = jax.random.uniform(kb, (out_channels,),
                              minval=-bound, maxval=bound, dtype=jnp.float32)

    out = sage_conv_with_edges(x, res_size, edge_index, edge_attr, weight, bias)
    out = jax.block_until_ready(out)

    ref = reference(x, res_size, edge_index, edge_attr, weight, bias)
    np.testing.assert_allclose(np.asarray(out), np.asarray(ref),
                               rtol=1e-5, atol=1e-5)
    print("KERNEL_OK")
</pallas_src>

<mosaic_0001>
module attributes {stable_mosaic.version = 11 : i64} {
  func.func @sage_conv_kernel(%arg0: i32, %arg1: memref<8x512xf32, #tpu.memory_space<vmem>>, %arg2: memref<512x1xi32, #tpu.memory_space<vmem>>, %arg3: memref<8x8xf32, #tpu.memory_space<vmem>>, %arg4: memref<8x1xf32, #tpu.memory_space<vmem>>, %arg5: memref<8x16xf32, #tpu.memory_space<vmem>>, %arg6: memref<1x16xf32, #tpu.memory_space<vmem>>) attributes {dimension_semantics = [#tpu.dimension_semantics<arbitrary>], iteration_bounds = array<i64: 1>, scalar_prefetch = 0 : i64, scratch_operands = 1 : i64, tpu.core_type = #tpu.core_type<tc>, window_params = [{transform_indices = @transform_0, window_bounds = array<i64: 8, 512>}, {transform_indices = @transform_1, window_bounds = array<i64: 512, 1>}, {pipeline_mode = #tpu.pipeline_mode<synchronous>, transform_indices = @transform_2, window_bounds = array<i64: 8, 8>}, {pipeline_mode = #tpu.pipeline_mode<synchronous>, transform_indices = @transform_3, window_bounds = array<i64: 8, 1>}, {pipeline_mode = #tpu.pipeline_mode<synchronous>, transform_indices = @transform_4, window_bounds = array<i64: 8, 16>}]} {
    %c512_i32 = arith.constant 512 : i32
    %0 = arith.muli %arg0, %c512_i32 : i32
    %c0_i32 = arith.constant 0 : i32
    %1 = arith.cmpi eq, %arg0, %c0_i32 : i32
    %2 = arith.extui %1 : i1 to i32
    %c0_i32_0 = arith.constant 0 : i32
    %3 = arith.cmpi ne, %2, %c0_i32_0 : i32
    scf.if %3 {
      %cst_20 = arith.constant 0.000000e+00 : f32
      %40 = vector.broadcast %cst_20 : f32 to vector<8x16xf32>
      %c0_21 = arith.constant 0 : index
      %c0_22 = arith.constant 0 : index
      %41 = vector.load %arg5[%c0_21, %c0_22] : memref<8x16xf32, #tpu.memory_space<vmem>>, vector<8x16xf32>
      tpu.vector_store %arg5[%c0_21, %c0_22], %40 {strides = array<i32>} : memref<8x16xf32, #tpu.memory_space<vmem>>, vector<8x16xf32>,
      %cst_23 = arith.constant 0.000000e+00 : f32
      %42 = vector.broadcast %cst_23 : f32 to vector<1x16xf32>
      %c0_24 = arith.constant 0 : index
      %c0_25 = arith.constant 0 : index
      %43 = vector.load %arg6[%c0_24, %c0_25] : memref<1x16xf32, #tpu.memory_space<vmem>>, vector<1x16xf32>
      tpu.vector_store %arg6[%c0_24, %c0_25], %42 {strides = array<i32>} : memref<1x16xf32, #tpu.memory_space<vmem>>, vector<1x16xf32>,
    } else {
    }
    %c0 = arith.constant 0 : index
    %c0_1 = arith.constant 0 : index
    %4 = vector.load %arg1[%c0, %c0_1] : memref<8x512xf32, #tpu.memory_space<vmem>>, vector<8x512xf32>
    %5 = arith.mulf %4, %4 : vector<8x512xf32>
    %cst = arith.constant dense<0.000000e+00> : vector<512xf32>
    %6 = vector.multi_reduction <add>, %5, %cst [0] : vector<8x512xf32> to vector<512xf32>
    %7 = vector.shape_cast %6 : vector<512xf32> to vector<1x512xf32>
    %cst_2 = arith.constant 1.000000e-24 : f32
    %8 = vector.broadcast %cst_2 : f32 to vector<1x512xf32>
    %9 = arith.maximumf %7, %8 : vector<1x512xf32>
    %10 = math.rsqrt %9 : vector<1x512xf32>
    %11 = vector.broadcast %10 : vector<1x512xf32> to vector<8x512xf32>
    %12 = arith.mulf %4, %11 : vector<8x512xf32>
    %c0_3 = arith.constant 0 : index
    %c0_4 = arith.constant 0 : index
    %13 = vector.load %arg3[%c0_3, %c0_4] : memref<8x8xf32, #tpu.memory_space<vmem>>, vector<8x8xf32>
    %cst_5 = arith.constant dense<0.000000e+00> : vector<8x512xf32>
    %14 = tpu.matmul %13, %12, %cst_5 {dimension_numbers = #tpu.dot_dimension_numbers<[1], [0], [0], [1], [0, 0, 1, 1], [], []>} : vector<8x8xf32>, vector<8x512xf32>, vector<8x512xf32> -> vector<8x512xf32>
    %c0_6 = arith.constant 0 : index
    %c0_7 = arith.constant 0 : index
    %15 = vector.load %arg2[%c0_6, %c0_7] : memref<512x1xi32, #tpu.memory_space<vmem>>, vector<512x1xi32>
    %16 = tpu.iota {dimensions = array<i32: 1>} : vector<512x16xi32>
    %17 = tpu.iota {dimensions = array<i32: 0>} : vector<512x1xi32>
    %18 = vector.broadcast %0 : i32 to vector<512x1xi32>
    %19 = arith.addi %18, %17 : vector<512x1xi32>
    %20 = vector.broadcast %15 : vector<512x1xi32> to vector<512x16xi32>
    %21 = arith.cmpi eq, %16, %20 : vector<512x16xi32>
    %c32_i32 = arith.constant 32 : i32
    %22 = vector.broadcast %c32_i32 : i32 to vector<512x1xi32>
    %23 = arith.cmpi slt, %19, %22 : vector<512x1xi32>
    %24 = vector.broadcast %23 : vector<512x1xi1> to vector<512x16xi1>
    %25 = arith.andi %21, %24 : vector<512x16xi1>
    %26 = arith.extui %25 : vector<512x16xi1> to vector<512x16xi32>
    %27 = arith.sitofp %26 : vector<512x16xi32> to vector<512x16xf32>
    %c0_8 = arith.constant 0 : index
    %c0_9 = arith.constant 0 : index
    %28 = vector.load %arg5[%c0_8, %c0_9] : memref<8x16xf32, #tpu.memory_space<vmem>>, vector<8x16xf32>
    %cst_10 = arith.constant dense<0.000000e+00> : vector<8x16xf32>
    %29 = tpu.matmul %14, %27, %cst_10 {dimension_numbers = #tpu.dot_dimension_numbers<[1], [0], [0], [1], [0, 0, 1, 1], [], []>} : vector<8x512xf32>, vector<512x16xf32>, vector<8x16xf32> -> vector<8x16xf32>
    %30 = arith.addf %28, %29 : vector<8x16xf32>
    %c0_11 = arith.constant 0 : index
    %c0_12 = arith.constant 0 : index
    %31 = vector.load %arg5[%c0_11, %c0_12] : memref<8x16xf32, #tpu.memory_space<vmem>>, vector<8x16xf32>
    tpu.vector_store %arg5[%c0_11, %c0_12], %30 {strides = array<i32>} : memref<8x16xf32, #tpu.memory_space<vmem>>, vector<8x16xf32>,
    %c0_13 = arith.constant 0 : index
    %c0_14 = arith.constant 0 : index
    %32 = vector.load %arg6[%c0_13, %c0_14] : memref<1x16xf32, #tpu.memory_space<vmem>>, vector<1x16xf32>
    %cst_15 = arith.constant dense<0.000000e+00> : vector<16xf32>
    %33 = vector.multi_reduction <add>, %27, %cst_15 [0] : vector<512x16xf32> to vector<16xf32>
    %34 = vector.shape_cast %33 : vector<16xf32> to vector<1x16xf32>
    %35 = arith.addf %32, %34 : vector<1x16xf32>
    %c0_16 = arith.constant 0 : index
    %c0_17 = arith.constant 0 : index
    %36 = vector.load %arg6[%c0_16, %c0_17] : memref<1x16xf32, #tpu.memory_space<vmem>>, vector<1x16xf32>
    tpu.vector_store %arg6[%c0_16, %c0_17], %35 {strides = array<i32>} : memref<1x16xf32, #tpu.memory_space<vmem>>, vector<1x16xf32>,
    %c0_i32_18 = arith.constant 0 : i32
    %37 = arith.cmpi eq, %arg0, %c0_i32_18 : i32
    %38 = arith.extui %37 : i1 to i32
    %c0_i32_19 = arith.constant 0 : i32
    %39 = arith.cmpi ne, %38, %c0_i32_19 : i32
    scf.if %39 {
      %c0_20 = arith.constant 0 : index
      %c0_21 = arith.constant 0 : index
      %40 = vector.load %arg5[%c0_20, %c0_21] : memref<8x16xf32, #tpu.memory_space<vmem>>, vector<8x16xf32>
      %c0_22 = arith.constant 0 : index
      %c0_23 = arith.constant 0 : index
      %41 = vector.load %arg6[%c0_22, %c0_23] : memref<1x16xf32, #tpu.memory_space<vmem>>, vector<1x16xf32>
      %cst_24 = arith.constant 1.000000e+00 : f32
      %42 = vector.broadcast %cst_24 : f32 to vector<1x16xf32>
      %43 = arith.maximumf %41, %42 : vector<1x16xf32>
      %44 = tpu.reciprocal %43 : vector<1x16xf32> -> vector<1x16xf32>
      %45 = vector.broadcast %44 : vector<1x16xf32> to vector<8x16xf32>
      %46 = arith.mulf %40, %45 : vector<8x16xf32>
      %c0_25 = arith.constant 0 : index
      %c0_26 = arith.constant 0 : index
      %47 = vector.load %arg4[%c0_25, %c0_26] : memref<8x1xf32, #tpu.memory_space<vmem>>, vector<8x1xf32>
      %48 = vector.broadcast %47 : vector<8x1xf32> to vector<8x16xf32>
      %49 = arith.addf %46, %48 : vector<8x16xf32>
      %50 = arith.mulf %49, %49 : vector<8x16xf32>
      %cst_27 = arith.constant dense<0.000000e+00> : vector<16xf32>
      %51 = vector.multi_reduction <add>, %50, %cst_27 [0] : vector<8x16xf32> to vector<16xf32>
      %52 = vector.shape_cast %51 : vector<16xf32> to vector<1x16xf32>
      %cst_28 = arith.constant 1.000000e-24 : f32
      %53 = vector.broadcast %cst_28 : f32 to vector<1x16xf32>
      %54 = arith.maximumf %52, %53 : vector<1x16xf32>
      %55 = math.rsqrt %54 : vector<1x16xf32>
      %56 = vector.broadcast %55 : vector<1x16xf32> to vector<8x16xf32>
      %57 = arith.mulf %49, %56 : vector<8x16xf32>
      %c0_29 = arith.constant 0 : index
      %c0_30 = arith.constant 0 : index
      %58 = vector.load %arg5[%c0_29, %c0_30] : memref<8x16xf32, #tpu.memory_space<vmem>>, vector<8x16xf32>
      tpu.vector_store %arg5[%c0_29, %c0_30], %57 {strides = array<i32>} : memref<8x16xf32, #tpu.memory_space<vmem>>, vector<8x16xf32>,
    } else {
    }
    return
  }
  func.func @transform_0(%arg0: i32) -> (i32, i32) {
    %c0_i32 = arith.constant 0 : i32
    %c0_i32_0 = arith.constant 0 : i32
    return %c0_i32, %arg0 : i32, i32
  }
  func.func @transform_1(%arg0: i32) -> (i32, i32) {
    %c0_i32 = arith.constant 0 : i32
    %c0_i32_0 = arith.constant 0 : i32
    return %arg0, %c0_i32 : i32, i32
  }
  func.func @transform_2(%arg0: i32) -> (i32, i32) {
    %c0_i32 = arith.constant 0 : i32
    %c0_i32_0 = arith.constant 0 : i32
    %c0_i32_1 = arith.constant 0 : i32
    return %c0_i32, %c0_i32_0 : i32, i32
  }
  func.func @transform_3(%arg0: i32) -> (i32, i32) {
    %c0_i32 = arith.constant 0 : i32
    %c0_i32_0 = arith.constant 0 : i32
    %c0_i32_1 = arith.constant 0 : i32
    return %c0_i32, %c0_i32_0 : i32, i32
  }
  func.func @transform_4(%arg0: i32) -> (i32, i32) {
    %c0_i32 = arith.constant 0 : i32
    %c0_i32_0 = arith.constant 0 : i32
    %c0_i32_1 = arith.constant 0 : i32
    return %c0_i32, %c0_i32_0 : i32, i32
  }
}

</mosaic_0001>

<llo_original>
// kernel: sage_conv_with_edges.1
$region0: #{sage_conv_with_edges.1}
  #allocation0 [shape = 'u32[]', space=smem, size = 0x4, offset = 0x4, fixed_abs, tag = 'smem constant byte address 0x4 - core index']
  #allocation1 [shape = 'u32[144,128]{1,0:T(1,128)}', space=vmem, size = 0x12000, scoped, tag = 'internal scratch']
  #allocation2 [shape = 'f32[1,16]{1,0:T(1,128)}', space=vmem, size = 0x200, scoped, tag = 'scratch operand']
  %s0 = inlined_call_operand.vmem [shape: f32[8,512], index: 0, kind: input, shape index: {}]
  %s1 = inlined_call_operand.vmem [shape: s32[512,1], index: 1, kind: input, shape index: {}]
  %s2 = inlined_call_operand.vmem [shape: f32[8,8], index: 2, kind: input, shape index: {}]
  %s3 = inlined_call_operand.vmem [shape: f32[8,1], index: 3, kind: input, shape index: {}]
  %s4 = inlined_call_operand.hbm [shape: f32[8,16], index: 4, kind: output, shape index: {}]
  %s5 = sld [smem:[#allocation0]]
  $region34: #{sage_conv_with_edges.1} parent=0
    _
  %s7 = ssub.s32 1, %s5
  %s8 = scalar_select 0, %s7, %s5
  $region1: #{sage_conv_with_edges.1} parent=0
    #allocation3 [shape = 'u8[4096]{0}', space=vmem, size = 0x1000, scoped, tag = 'output window, operand 0, single buffered']
    #allocation4 [shape = 's32[1]{0}', space=sflag, size = 0x4, scoped, tag = 'scoped memory for sage_conv_with_edges.1']
    %9 = vsyncpa [#allocation4], 0
    // Predicated region
    $region2: #{sage_conv_with_edges.1} parent=1 // pred_check
      _
    $region3: #{sage_conv_with_edges.1} parent=1 // pred_check_branch
      %11 = sbr.rel (0) target = $region5
    $region4: #{sage_conv_with_edges.1} parent=1 // pred_region
      _
    $region5: #{sage_conv_with_edges.1} parent=1 // pred_fallthru
      _
    // Predicated region
    $region6: #{sage_conv_with_edges.1} parent=1 // pred_check
      _
    $region7: #{sage_conv_with_edges.1} parent=1 // pred_check_branch
      %13 = sbr.rel (0) target = $region9
    $region8: #{sage_conv_with_edges.1} parent=1 // pred_region
      _
    $region9: #{sage_conv_with_edges.1} parent=1 // pred_fallthru
      _
    // Predicated region
    $region10: #{sage_conv_with_edges.1} parent=1 // pred_check
      _
    $region11: #{sage_conv_with_edges.1} parent=1 // pred_check_branch
      %15 = sbr.rel (0) target = $region13
    $region12: #{sage_conv_with_edges.1} parent=1 // pred_region
      _
    $region13: #{sage_conv_with_edges.1} parent=1 // pred_fallthru
      _
    // Predicated region
    $region14: #{sage_conv_with_edges.1} parent=1 // pred_check
      _
    $region15: #{sage_conv_with_edges.1} parent=1 // pred_check_branch
      %17 = sbr.rel (0) target = $region17
    $region16: #{sage_conv_with_edges.1} parent=1 // pred_region
      _
    $region17: #{sage_conv_with_edges.1} parent=1 // pred_fallthru
      _
    %s18 = smul.u32 0, 512
    %p19 = scmp.eq.s32.totalorder 0, 0
    // Predicated region
    $region18: #{sage_conv_with_edges.1} parent=1 // pred_check
      %p20 = pneg %p19
    $region19: #{sage_conv_with_edges.1} parent=1 // pred_check_branch
      %22 = sbr.rel (%p20) target = $region21
    $region20: #{sage_conv_with_edges.1} parent=1 // pred_region
      %vm23 = vcmask 130048
      %24 = vst.msk [vmem:[#allocation3] sm:$0xff] %vm23, 0.0
      %vm25 = vcmask 122880
      %26 = vst.msk [vmem:[#allocation2] sm:$0x1] %vm25, 0.0
    $region21: #{sage_conv_with_edges.1} parent=1 // pred_fallthru
      _
    %v27 = vld [vmem:[%s0] sm:$0xff]
    %v28 = vld [vmem:[%s0 + $0x8] sm:$0xff]
    %v29 = vld [vmem:[%s0 + $0x10] sm:$0xff]
    %v30 = vld [vmem:[%s0 + $0x18] sm:$0xff]
    %v31 = vmul.f32 %v27, %v27
    %v32 = vmul.f32 %v28, %v28
    %v33 = vmul.f32 %v29, %v29
    %v34 = vmul.f32 %v30, %v30
    %v35 = vrot.slane %v31, 4
    %v36 = vadd.f32 %v31, %v35
    %v37 = vrot.slane %v36, 2
    %v38 = vadd.f32 %v36, %v37
    %v39 = vrot.slane %v38, 1
    %v40 = vadd.f32 %v38, %v39
    %v41 = vrot.slane %v32, 4
    %v42 = vadd.f32 %v32, %v41
    %v43 = vrot.slane %v42, 2
    %v44 = vadd.f32 %v42, %v43
    %v45 = vrot.slane %v44, 1
    %v46 = vadd.f32 %v44, %v45
    %v47 = vrot.slane %v33, 4
    %v48 = vadd.f32 %v33, %v47
    %v49 = vrot.slane %v48, 2
    %v50 = vadd.f32 %v48, %v49
    %v51 = vrot.slane %v50, 1
    %v52 = vadd.f32 %v50, %v51
    %v53 = vrot.slane %v34, 4
    %v54 = vadd.f32 %v34, %v53
    %v55 = vrot.slane %v54, 2
    %v56 = vadd.f32 %v54, %v55
    %v57 = vrot.slane %v56, 1
    %v58 = vadd.f32 %v56, %v57
    %v59 = vmax.f32 %v40, 1e-24
    %v60 = vmax.f32 %v46, 1e-24
    %v61 = vmax.f32 %v52, 1e-24
    %v62 = vmax.f32 %v58, 1e-24
    %v63 = vrsqrt.pop %v59
    %v64 = vrsqrt.pop %v60
    %v65 = vrsqrt.pop %v61
    %v66 = vrsqrt.pop %v62
    %v67 = vmul.f32 %v27, %v63
    %v68 = vmul.f32 %v28, %v64
    %v69 = vmul.f32 %v29, %v65
    %v70 = vmul.f32 %v30, %v66
    %v71 = vld [vmem:[%s2] sm:$0xff]
    %vm72 = vcmask 64512
    %v74 = vsel %vm72, %v71, 0
    %76 = vmatprep.subr.mxu0 0.0
    %77 = vmatpush1.msra.mxu0 0.0
    %78 = vmatprep.subr.mxu0 0.0
    %79 = vmatpush1.msra.mxu0 0.0
    %80 = vmatprep.subr.mxu0 0.0
    %81 = vmatpush1.msra.mxu0 0.0
    %82 = vmatprep.subr.mxu0 0.0
    %83 = vmatpush1.msra.mxu0 0.0
    %84 = vmatprep.subr.mxu0 0.0
    %85 = vmatpush1.msra.mxu0 0.0
    %86 = vmatprep.subr.mxu0 0.0
    %87 = vmatpush1.msra.mxu0 0.0
    %88 = vmatprep.subr.mxu0 0.0
    %89 = vmatpush1.msra.mxu0 0.0
    %90 = vmatprep.subr.mxu0 0.0
    %91 = vmatpush1.msra.mxu0 0.0
    %92 = vmatprep.subr.mxu0 0.0
    %93 = vmatpush1.msra.mxu0 0.0
    %94 = vmatprep.subr.mxu0 0.0
    %95 = vmatpush1.msra.mxu0 0.0
    %96 = vmatprep.subr.mxu0 0.0
    %97 = vmatpush1.msra.mxu0 0.0
    %98 = vmatprep.subr.mxu0 0.0
    %99 = vmatpush1.msra.mxu0 0.0
    %100 = vmatprep.subr.mxu0 0.0
    %101 = vmatpush1.msra.mxu0 0.0
    %102 = vmatprep.subr.mxu0 0.0
    %103 = vmatpush1.msra.mxu0 0.0
    %104 = vmatprep.subr.mxu0 0.0
    %105 = vmatpush1.msra.mxu0 0.0
    %106 = vmatprep.subr.mxu0 %v68
    %107 = vmatpush1.msra.mxu0 %v67
    %108 = vmatprep.subr.mxu0 0.0
    %109 = vmatpush2.msra.mxu0 0.0
    %110 = vmatprep.subr.mxu0 0.0
    %111 = vmatpush2.msra.mxu0 0.0
    %112 = vmatprep.subr.mxu0 0.0
    %113 = vmatpush2.msra.mxu0 0.0
    %114 = vmatprep.subr.mxu0 0.0
    %115 = vmatpush2.msra.mxu0 0.0
    %116 = vmatprep.subr.mxu0 0.0
    %117 = vmatpush2.msra.mxu0 0.0
    %118 = vmatprep.subr.mxu0 0.0
    %119 = vmatpush2.msra.mxu0 0.0
    %120 = vmatprep.subr.mxu0 0.0
    %121 = vmatpush2.msra.mxu0 0.0
    %122 = vmatprep.subr.mxu0 0.0
    %123 = vmatpush2.msra.mxu0 0.0
    %124 = vmatprep.subr.mxu0 0.0
    %125 = vmatpush2.msra.mxu0 0.0
    %126 = vmatprep.subr.mxu0 0.0
    %127 = vmatpush2.msra.mxu0 0.0
    %128 = vmatprep.subr.mxu0 0.0
    %129 = vmatpush2.msra.mxu0 0.0
    %130 = vmatprep.subr.mxu0 0.0
    %131 = vmatpush2.msra.mxu0 0.0
    %132 = vmatprep.subr.mxu0 0.0
    %133 = vmatpush2.msra.mxu0 0.0
    %134 = vmatprep.subr.mxu0 0.0
    %135 = vmatpush2.msra.mxu0 0.0
    %136 = vmatprep.subr.mxu0 0.0
    %137 = vmatpush2.msra.mxu0 0.0
    %138 = vmatprep.subr.mxu0 0.0
    %139 = vmatpush2.msra.mxu0 0.0
    %140 = vmatprep.mubr.f32.mxu0 0.0
    %141 = vmatmul.mubr.f32.gmra.mxu0 %v74
    %v142 = vpop.f32.mrf.mxu0
    %v143 = vadd.f32 0.0, %v142
    %v144 = vpop.f32.mrf.mxu0
    %v145 = vadd.f32 0.0, %v144
    %146 = vdwg.mxu0
    %147 = vmatprep.subr.mxu0 0.0
    %148 = vmatpush1.msra.mxu0 0.0
    %149 = vmatprep.subr.mxu0 0.0
    %150 = vmatpush1.msra.mxu0 0.0
    %151 = vmatprep.subr.mxu0 0.0
    %152 = vmatpush1.msra.mxu0 0.0
    %153 = vmatprep.subr.mxu0 0.0
    %154 = vmatpush1.msra.mxu0 0.0
    %155 = vmatprep.subr.mxu0 0.0
    %156 = vmatpush1.msra.mxu0 0.0
    %157 = vmatprep.subr.mxu0 0.0
    %158 = vmatpush1.msra.mxu0 0.0
    %159 = vmatprep.subr.mxu0 0.0
    %160 = vmatpush1.msra.mxu0 0.0
    %161 = vmatprep.subr.mxu0 0.0
    %162 = vmatpush1.msra.mxu0 0.0
    %163 = vmatprep.subr.mxu0 0.0
    %164 = vmatpush1.msra.mxu0 0.0
    %165 = vmatprep.subr.mxu0 0.0
    %166 = vmatpush1.msra.mxu0 0.0
    %167 = vmatprep.subr.mxu0 0.0
    %168 = vmatpush1.msra.mxu0 0.0
    %169 = vmatprep.subr.mxu0 0.0
    %170 = vmatpush1.msra.mxu0 0.0
    %171 = vmatprep.subr.mxu0 0.0
    %172 = vmatpush1.msra.mxu0 0.0
    %173 = vmatprep.subr.mxu0 0.0
    %174 = vmatpush1.msra.mxu0 0.0
    %175 = vmatprep.subr.mxu0 0.0
    %176 = vmatpush1.msra.mxu0 0.0
    %177 = vmatprep.subr.mxu0 %v70
    %178 = vmatpush1.msra.mxu0 %v69
    %179 = vmatprep.subr.mxu0 0.0
    %180 = vmatpush2.msra.mxu0 0.0
    %181 = vmatprep.subr.mxu0 0.0
    %182 = vmatpush2.msra.mxu0 0.0
    %183 = vmatprep.subr.mxu0 0.0
    %184 = vmatpush2.msra.mxu0 0.0
    %185 = vmatprep.subr.mxu0 0.0
    %186 = vmatpush2.msra.mxu0 0.0
    %187 = vmatprep.subr.mxu0 0.0
    %188 = vmatpush2.msra.mxu0 0.0
    %189 = vmatprep.subr.mxu0 0.0
    %190 = vmatpush2.msra.mxu0 0.0
    %191 = vmatprep.subr.mxu0 0.0
    %192 = vmatpush2.msra.mxu0 0.0
    %193 = vmatprep.subr.mxu0 0.0
    %194 = vmatpush2.msra.mxu0 0.0
    %195 = vmatprep.subr.mxu0 0.0
    %196 = vmatpush2.msra.mxu0 0.0
    %197 = vmatprep.subr.mxu0 0.0
    %198 = vmatpush2.msra.mxu0 0.0
    %199 = vmatprep.subr.mxu0 0.0
    %200 = vmatpush2.msra.mxu0 0.0
    %201 = vmatprep.subr.mxu0 0.0
    %202 = vmatpush2.msra.mxu0 0.0
    %203 = vmatprep.subr.mxu0 0.0
    %204 = vmatpush2.msra.mxu0 0.0
    %205 = vmatprep.subr.mxu0 0.0
    %206 = vmatpush2.msra.mxu0 0.0
    %207 = vmatprep.subr.mxu0 0.0
    %208 = vmatpush2.msra.mxu0 0.0
    %209 = vmatprep.subr.mxu0 0.0
    %210 = vmatpush2.msra.mxu0 0.0
    %211 = vmatprep.mubr.f32.mxu0 0.0
    %212 = vmatmul.mubr.f32.gmra.mxu0 %v74
    %v213 = vpop.f32.mrf.mxu0
    %v214 = vadd.f32 0.0, %v213
    %v215 = vpop.f32.mrf.mxu0
    %v216 = vadd.f32 0.0, %v215
    %217 = vdwg.mxu0
    %v218 = vld [vmem:[%s1] sm:$0xff]
    %v219 = vld [vmem:[%s1 + $0x8] sm:$0xff]
    %v220 = vld [vmem:[%s1 + $0x10] sm:$0xff]
    %v221 = vld [vmem:[%s1 + $0x18] sm:$0xff]
    %v222 = vld [vmem:[%s1 + $0x20] sm:$0xff]
    %v223 = vld [vmem:[%s1 + $0x28] sm:$0xff]
    %v224 = vld [vmem:[%s1 + $0x30] sm:$0xff]
    %v225 = vld [vmem:[%s1 + $0x38] sm:$0xff]
    %v226 = vld [vmem:[%s1 + $0x40] sm:$0xff]
    %v227 = vld [vmem:[%s1 + $0x48] sm:$0xff]
    %v228 = vld [vmem:[%s1 + $0x50] sm:$0xff]
    %v229 = vld [vmem:[%s1 + $0x58] sm:$0xff]
    %v230 = vld [vmem:[%s1 + $0x60] sm:$0xff]
    %v231 = vld [vmem:[%s1 + $0x68] sm:$0xff]
    %v232 = vld [vmem:[%s1 + $0x70] sm:$0xff]
    %v233 = vld [vmem:[%s1 + $0x78] sm:$0xff]
    %v234 = vld [vmem:[%s1 + $0x80] sm:$0xff]
    %v235 = vld [vmem:[%s1 + $0x88] sm:$0xff]
    %v236 = vld [vmem:[%s1 + $0x90] sm:$0xff]
    %v237 = vld [vmem:[%s1 + $0x98] sm:$0xff]
    %v238 = vld [vmem:[%s1 + $0xa0] sm:$0xff]
    %v239 = vld [vmem:[%s1 + $0xa8] sm:$0xff]
    %v240 = vld [vmem:[%s1 + $0xb0] sm:$0xff]
    %v241 = vld [vmem:[%s1 + $0xb8] sm:$0xff]
    %v242 = vld [vmem:[%s1 + $0xc0] sm:$0xff]
    %v243 = vld [vmem:[%s1 + $0xc8] sm:$0xff]
    %v244 = vld [vmem:[%s1 + $0xd0] sm:$0xff]
    %v245 = vld [vmem:[%s1 + $0xd8] sm:$0xff]
    %v246 = vld [vmem:[%s1 + $0xe0] sm:$0xff]
    %v247 = vld [vmem:[%s1 + $0xe8] sm:$0xff]
    %v248 = vld [vmem:[%s1 + $0xf0] sm:$0xff]
    %v249 = vld [vmem:[%s1 + $0xf8] sm:$0xff]
    %v250 = vld [vmem:[%s1 + $0x100] sm:$0xff]
    %v251 = vld [vmem:[%s1 + $0x108] sm:$0xff]
    %v252 = vld [vmem:[%s1 + $0x110] sm:$0xff]
    %v253 = vld [vmem:[%s1 + $0x118] sm:$0xff]
    %v254 = vld [vmem:[%s1 + $0x120] sm:$0xff]
    %v255 = vld [vmem:[%s1 + $0x128] sm:$0xff]
    %v256 = vld [vmem:[%s1 + $0x130] sm:$0xff]
    %v257 = vld [vmem:[%s1 + $0x138] sm:$0xff]
    %v258 = vld [vmem:[%s1 + $0x140] sm:$0xff]
    %v259 = vld [vmem:[%s1 + $0x148] sm:$0xff]
    %v260 = vld [vmem:[%s1 + $0x150] sm:$0xff]
    %v261 = vld [vmem:[%s1 + $0x158] sm:$0xff]
    %v262 = vld [vmem:[%s1 + $0x160] sm:$0xff]
    %v263 = vld [vmem:[%s1 + $0x168] sm:$0xff]
    %v264 = vld [vmem:[%s1 + $0x170] sm:$0xff]
    %v265 = vld [vmem:[%s1 + $0x178] sm:$0xff]
    %v266 = vld [vmem:[%s1 + $0x180] sm:$0xff]
    %v267 = vld [vmem:[%s1 + $0x188] sm:$0xff]
    %v268 = vld [vmem:[%s1 + $0x190] sm:$0xff]
    %v269 = vld [vmem:[%s1 + $0x198] sm:$0xff]
    %v270 = vld [vmem:[%s1 + $0x1a0] sm:$0xff]
    %v271 = vld [vmem:[%s1 + $0x1a8] sm:$0xff]
    %v272 = vld [vmem:[%s1 + $0x1b0] sm:$0xff]
    %v273 = vld [vmem:[%s1 + $0x1b8] sm:$0xff]
    %v274 = vld [vmem:[%s1 + $0x1c0] sm:$0xff]
    %v275 = vld [vmem:[%s1 + $0x1c8] sm:$0xff]
    %v276 = vld [vmem:[%s1 + $0x1d0] sm:$0xff]
    %v277 = vld [vmem:[%s1 + $0x1d8] sm:$0xff]
    %v278 = vld [vmem:[%s1 + $0x1e0] sm:$0xff]
    %v279 = vld [vmem:[%s1 + $0x1e8] sm:$0xff]
    %v280 = vld [vmem:[%s1 + $0x1f0] sm:$0xff]
    %v281 = vld [vmem:[%s1 + $0x1f8] sm:$0xff]
    %v282 = vlaneseq
    %v283 = vand.u32 %v282, 127
    %v284 = vlaneseq
    %v285 = vshrl.u32 %v284, 7
    %v286 = vadd.s32 %v285, 8
    %v287 = vadd.s32 %v285, 16
    %v288 = vadd.s32 %v285, 24
    %v289 = vadd.s32 %v285, 32
    %v290 = vadd.s32 %v285, 40
    %v291 = vadd.s32 %v285, 48
    %v292 = vadd.s32 %v285, 56
    %v293 = vadd.s32 %v285, 64
    %v294 = vadd.s32 %v285, 72
    %v295 = vadd.s32 %v285, 80
    %v296 = vadd.s32 %v285, 88
    %v297 = vadd.s32 %v285, 96
    %v298 = vadd.s32 %v285, 104
    %v299 = vadd.s32 %v285, 112
    %v300 = vadd.s32 %v285, 120
    %v301 = vadd.s32 %v285, 128
    %v302 = vadd.s32 %v285, 136
    %v303 = vadd.s32 %v285, 144
    %v304 = vadd.s32 %v285, 152
    %v305 = vadd.s32 %v285, 160
    %v306 = vadd.s32 %v285, 168
    %v307 = vadd.s32 %v285, 176
    %v308 = vadd.s32 %v285, 184
    %v309 = vadd.s32 %v285, 192
    %v310 = vadd.s32 %v285, 200
    %v311 = vadd.s32 %v285, 208
    %v312 = vadd.s32 %v285, 216
    %v313 = vadd.s32 %v285, 224
    %v314 = vadd.s32 %v285, 232
    %v315 = vadd.s32 %v285, 240
    %v316 = vadd.s32 %v285, 248
    %v317 = vadd.s32 %v285, 256
    %v318 = vadd.s32 %v285, 264
    %v319 = vadd.s32 %v285, 272
    %v320 = vadd.s32 %v285, 280
    %v321 = vadd.s32 %v285, 288
    %v322 = vadd.s32 %v285, 296
    %v323 = vadd.s32 %v285, 304
    %v324 = vadd.s32 %v285, 312
    %v325 = vadd.s32 %v285, 320
    %v326 = vadd.s32 %v285, 328
    %v327 = vadd.s32 %v285, 336
    %v328 = vadd.s32 %v285, 344
    %v329 = vadd.s32 %v285, 352
    %v330 = vadd.s32 %v285, 360
    %v331 = vadd.s32 %v285, 368
    %v332 = vadd.s32 %v285, 376
    %v333 = vadd.s32 %v285, 384
    %v334 = vadd.s32 %v285, 392
    %v335 = vadd.s32 %v285, 400
    %v336 = vadd.s32 %v285, 408
    %v337 = vadd.s32 %v285, 416
    %v338 = vadd.s32 %v285, 424
    %v339 = vadd.s32 %v285, 432
    %v340 = vadd.s32 %v285, 440
    %v341 = vadd.s32 %v285, 448
    %v342 = vadd.s32 %v285, 456
    %v343 = vadd.s32 %v285, 464
    %v344 = vadd.s32 %v285, 472
    %v345 = vadd.s32 %v285, 480
    %v346 = vadd.s32 %v285, 488
    %v347 = vadd.s32 %v285, 496
    %v348 = vadd.s32 %v285, 504
    %v349 = vstv %s18
    %v350 = vadd.s32 %v349, %v285
    %v351 = vadd.s32 %v349, %v286
    %v352 = vadd.s32 %v349, %v287
    %v353 = vadd.s32 %v349, %v288
    %v354 = vadd.s32 %v349, %v289
    %v355 = vadd.s32 %v349, %v290
    %v356 = vadd.s32 %v349, %v291
    %v357 = vadd.s32 %v349, %v292
    %v358 = vadd.s32 %v349, %v293
    %v359 = vadd.s32 %v349, %v294
    %v360 = vadd.s32 %v349, %v295
    %v361 = vadd.s32 %v349, %v296
    %v362 = vadd.s32 %v349, %v297
    %v363 = vadd.s32 %v349, %v298
    %v364 = vadd.s32 %v349, %v299
    %v365 = vadd.s32 %v349, %v300
    %v366 = vadd.s32 %v349, %v301
    %v367 = vadd.s32 %v349, %v302
    %v368 = vadd.s32 %v349, %v303
    %v369 = vadd.s32 %v349, %v304
    %v370 = vadd.s32 %v349, %v305
    %v371 = vadd.s32 %v349, %v306
    %v372 = vadd.s32 %v349, %v307
    %v373 = vadd.s32 %v349, %v308
    %v374 = vadd.s32 %v349, %v309
    %v375 = vadd.s32 %v349, %v310
    %v376 = vadd.s32 %v349, %v311
    %v377 = vadd.s32 %v349, %v312
    %v378 = vadd.s32 %v349, %v313
    %v379 = vadd.s32 %v349, %v314
    %v380 = vadd.s32 %v349, %v315
    %v381 = vadd.s32 %v349, %v316
    %v382 = vadd.s32 %v349, %v317
    %v383 = vadd.s32 %v349, %v318
    %v384 = vadd.s32 %v349, %v319
    %v385 = vadd.s32 %v349, %v320
    %v386 = vadd.s32 %v349, %v321
    %v387 = vadd.s32 %v349, %v322
    %v388 = vadd.s32 %v349, %v323
    %v389 = vadd.s32 %v349, %v324
    %v390 = vadd.s32 %v349, %v325
    %v391 = vadd.s32 %v349, %v326
    %v392 = vadd.s32 %v349, %v327
    %v393 = vadd.s32 %v349, %v328
    %v394 = vadd.s32 %v349, %v329
    %v395 = vadd.s32 %v349, %v330
    %v396 = vadd.s32 %v349, %v331
    %v397 = vadd.s32 %v349, %v332
    %v398 = vadd.s32 %v349, %v333
    %v399 = vadd.s32 %v349, %v334
    %v400 = vadd.s32 %v349, %v335
    %v401 = vadd.s32 %v349, %v336
    %v402 = vadd.s32 %v349, %v337
    %v403 = vadd.s32 %v349, %v338
    %v404 = vadd.s32 %v349, %v339
    %v405 = vadd.s32 %v349, %v340
    %v406 = vadd.s32 %v349, %v341
    %v407 = vadd.s32 %v349, %v342
    %v408 = vadd.s32 %v349, %v343
    %v409 = vadd.s32 %v349, %v344
    %v410 = vadd.s32 %v349, %v345
    %v411 = vadd.s32 %v349, %v346
    %v412 = vadd.s32 %v349, %v347
    %v413 = vadd.s32 %v349, %v348
    %414 = vset.pattern.permute.xlu0 0
    %415 = vperm.xlu0 %414, %v218
    %v416 = vpop.permute.xlu0 %415
    %417 = vset.pattern.permute.xlu0 0
    %418 = vperm.xlu0 %417, %v219
    %v419 = vpop.permute.xlu0 %418
    %420 = vset.pattern.permute.xlu0 0
    %421 = vperm.xlu0 %420, %v220
    %v422 = vpop.permute.xlu0 %421
    %423 = vset.pattern.permute.xlu0 0
    %424 = vperm.xlu0 %423, %v221
    %v425 = vpop.permute.xlu0 %424
    %426 = vset.pattern.permute.xlu0 0
    %427 = vperm.xlu0 %426, %v222
    %v428 = vpop.permute.xlu0 %427
    %429 = vset.pattern.permute.xlu0 0
    %430 = vperm.xlu0 %429, %v223
    %v431 = vpop.permute.xlu0 %430
    %432 = vset.pattern.permute.xlu0 0
    %433 = vperm.xlu0 %432, %v224
    %v434 = vpop.permute.xlu0 %433
    %435 = vset.pattern.permute.xlu0 0
    %436 = vperm.xlu0 %435, %v225
    %v437 = vpop.permute.xlu0 %436
    %438 = vset.pattern.permute.xlu0 0
    %439 = vperm.xlu0 %438, %v226
    %v440 = vpop.permute.xlu0 %439
    %441 = vset.pattern.permute.xlu0 0
    %442 = vperm.xlu0 %441, %v227
    %v443 = vpop.permute.xlu0 %442
    %444 = vset.pattern.permute.xlu0 0
    %445 = vperm.xlu0 %444, %v228
    %v446 = vpop.permute.xlu0 %445
    %447 = vset.pattern.permute.xlu0 0
    %448 = vperm.xlu0 %447, %v229
    %v449 = vpop.permute.xlu0 %448
    %450 = vset.pattern.permute.xlu0 0
    %451 = vperm.xlu0 %450, %v230
    %v452 = vpop.permute.xlu0 %451
    %453 = vset.pattern.permute.xlu0 0
    %454 = vperm.xlu0 %453, %v231
    %v455 = vpop.permute.xlu0 %454
    %456 = vset.pattern.permute.xlu0 0
    %457 = vperm.xlu0 %456, %v232
    %v458 = vpop.permute.xlu0 %457
    %459 = vset.pattern.permute.xlu0 0
    %460 = vperm.xlu0 %459, %v233
    %v461 = vpop.permute.xlu0 %460
    %462 = vset.pattern.permute.xlu0 0
    %463 = vperm.xlu0 %462, %v234
    %v464 = vpop.permute.xlu0 %463
    %465 = vset.pattern.permute.xlu0 0
    %466 = vperm.xlu0 %465, %v235
    %v467 = vpop.permute.xlu0 %466
    %468 = vset.pattern.permute.xlu0 0
    %469 = vperm.xlu0 %468, %v236
    %v470 = vpop.permute.xlu0 %469
    %471 = vset.pattern.permute.xlu0 0
    %472 = vperm.xlu0 %471, %v237
    %v473 = vpop.permute.xlu0 %472
    %474 = vset.pattern.permute.xlu0 0
    %475 = vperm.xlu0 %474, %v238
    %v476 = vpop.permute.xlu0 %475
    %477 = vset.pattern.permute.xlu0 0
    %478 = vperm.xlu0 %477, %v239
    %v479 = vpop.permute.xlu0 %478
    %480 = vset.pattern.permute.xlu0 0
    %481 = vperm.xlu0 %480, %v240
    %v482 = vpop.permute.xlu0 %481
    %483 = vset.pattern.permute.xlu0 0
    %484 = vperm.xlu0 %483, %v241
    %v485 = vpop.permute.xlu0 %484
    %486 = vset.pattern.permute.xlu0 0
    %487 = vperm.xlu0 %486, %v242
    %v488 = vpop.permute.xlu0 %487
    %489 = vset.pattern.permute.xlu0 0
    %490 = vperm.xlu0 %489, %v243
    %v491 = vpop.permute.xlu0 %490
    %492 = vset.pattern.permute.xlu0 0
    %493 = vperm.xlu0 %492, %v244
    %v494 = vpop.permute.xlu0 %493
    %495 = vset.pattern.permute.xlu0 0
    %496 = vperm.xlu0 %495, %v245
    %v497 = vpop.permute.xlu0 %496
    %498 = vset.pattern.permute.xlu0 0
    %499 = vperm.xlu0 %498, %v246
    %v500 = vpop.permute.xlu0 %499
    %501 = vset.pattern.permute.xlu0 0
    %502 = vperm.xlu0 %501, %v247
    %v503 = vpop.permute.xlu0 %502
    %504 = vset.pattern.permute.xlu0 0
    %505 = vperm.xlu0 %504, %v248
    %v506 = vpop.permute.xlu0 %505
    %507 = vset.pattern.permute.xlu0 0
    %508 = vperm.xlu0 %507, %v249
    %v509 = vpop.permute.xlu0 %508
    %510 = vset.pattern.permute.xlu0 0
    %511 = vperm.xlu0 %510, %v250
    %v512 = vpop.permute.xlu0 %511
    %513 = vset.pattern.permute.xlu0 0
    %514 = vperm.xlu0 %513, %v251
    %v515 = vpop.permute.xlu0 %514
    %516 = vset.pattern.permute.xlu0 0
    %517 = vperm.xlu0 %516, %v252
    %v518 = vpop.permute.xlu0 %517
    %519 = vset.pattern.permute.xlu0 0
    %520 = vperm.xlu0 %519, %v253
    %v521 = vpop.permute.xlu0 %520
    %522 = vset.pattern.permute.xlu0 0
    %523 = vperm.xlu0 %522, %v254
    %v524 = vpop.permute.xlu0 %523
    %525 = vset.pattern.permute.xlu0 0
    %526 = vperm.xlu0 %525, %v255
    %v527 = vpop.permute.xlu0 %526
    %528 = vset.pattern.permute.xlu0 0
    %529 = vperm.xlu0 %528, %v256
    %v530 = vpop.permute.xlu0 %529
    %531 = vset.pattern.permute.xlu0 0
    %532 = vperm.xlu0 %531, %v257
    %v533 = vpop.permute.xlu0 %532
    %534 = vset.pattern.permute.xlu0 0
    %535 = vperm.xlu0 %534, %v258
    %v536 = vpop.permute.xlu0 %535
    %537 = vset.pattern.permute.xlu0 0
    %538 = vperm.xlu0 %537, %v259
    %v539 = vpop.permute.xlu0 %538
    %540 = vset.pattern.permute.xlu0 0
    %541 = vperm.xlu0 %540, %v260
    %v542 = vpop.permute.xlu0 %541
    %543 = vset.pattern.permute.xlu0 0
    %544 = vperm.xlu0 %543, %v261
    %v545 = vpop.permute.xlu0 %544
    %546 = vset.pattern.permute.xlu0 0
    %547 = vperm.xlu0 %546, %v262
    %v548 = vpop.permute.xlu0 %547
    %549 = vset.pattern.permute.xlu0 0
    %550 = vperm.xlu0 %549, %v263
    %v551 = vpop.permute.xlu0 %550
    %552 = vset.pattern.permute.xlu0 0
    %553 = vperm.xlu0 %552, %v264
    %v554 = vpop.permute.xlu0 %553
    %555 = vset.pattern.permute.xlu0 0
    %556 = vperm.xlu0 %555, %v265
    %v557 = vpop.permute.xlu0 %556
    %558 = vset.pattern.permute.xlu0 0
    %559 = vperm.xlu0 %558, %v266
    %v560 = vpop.permute.xlu0 %559
    %561 = vset.pattern.permute.xlu0 0
    %562 = vperm.xlu0 %561, %v267
    %v563 = vpop.permute.xlu0 %562
    %564 = vset.pattern.permute.xlu0 0
    %565 = vperm.xlu0 %564, %v268
    %v566 = vpop.permute.xlu0 %565
    %567 = vset.pattern.permute.xlu0 0
    %568 = vperm.xlu0 %567, %v269
    %v569 = vpop.permute.xlu0 %568
    %570 = vset.pattern.permute.xlu0 0
    %571 = vperm.xlu0 %570, %v270
    %v572 = vpop.permute.xlu0 %571
    %573 = vset.pattern.permute.xlu0 0
    %574 = vperm.xlu0 %573, %v271
    %v575 = vpop.permute.xlu0 %574
    %576 = vset.pattern.permute.xlu0 0
    %577 = vperm.xlu0 %576, %v272
    %v578 = vpop.permute.xlu0 %577
    %579 = vset.pattern.permute.xlu0 0
    %580 = vperm.xlu0 %579, %v273
    %v581 = vpop.permute.xlu0 %580
    %582 = vset.pattern.permute.xlu0 0
    %583 = vperm.xlu0 %582, %v274
    %v584 = vpop.permute.xlu0 %583
    %585 = vset.pattern.permute.xlu0 0
    %586 = vperm.xlu0 %585, %v275
    %v587 = vpop.permute.xlu0 %586
    %588 = vset.pattern.permute.xlu0 0
    %589 = vperm.xlu0 %588, %v276
    %v590 = vpop.permute.xlu0 %589
    %591 = vset.pattern.permute.xlu0 0
    %592 = vperm.xlu0 %591, %v277
    %v593 = vpop.permute.xlu0 %592
    %594 = vset.pattern.permute.xlu0 0
    %595 = vperm.xlu0 %594, %v278
    %v596 = vpop.permute.xlu0 %595
    %597 = vset.pattern.permute.xlu0 0
    %598 = vperm.xlu0 %597, %v279
    %v599 = vpop.permute.xlu0 %598
    %600 = vset.pattern.permute.xlu0 0
    %601 = vperm.xlu0 %600, %v280
    %v602 = vpop.permute.xlu0 %601
    %603 = vset.pattern.permute.xlu0 0
    %604 = vperm.xlu0 %603, %v281
    %v605 = vpop.permute.xlu0 %604
    %vm606 = vcmp.eq.s32.totalorder %v283, %v416
    %vm607 = vcmp.eq.s32.totalorder %v283, %v419
    %vm608 = vcmp.eq.s32.totalorder %v283, %v422
    %vm609 = vcmp.eq.s32.totalorder %v283, %v425
    %vm610 = vcmp.eq.s32.totalorder %v283, %v428
    %vm611 = vcmp.eq.s32.totalorder %v283, %v431
    %vm612 = vcmp.eq.s32.totalorder %v283, %v434
    %vm613 = vcmp.eq.s32.totalorder %v283, %v437
    %vm614 = vcmp.eq.s32.totalorder %v283, %v440
    %vm615 = vcmp.eq.s32.totalorder %v283, %v443
    %vm616 = vcmp.eq.s32.totalorder %v283, %v446
    %vm617 = vcmp.eq.s32.totalorder %v283, %v449
    %vm618 = vcmp.eq.s32.totalorder %v283, %v452
    %vm619 = vcmp.eq.s32.totalorder %v283, %v455
    %vm620 = vcmp.eq.s32.totalorder %v283, %v458
    %vm621 = vcmp.eq.s32.totalorder %v283, %v461
    %vm622 = vcmp.eq.s32.totalorder %v283, %v464
    %vm623 = vcmp.eq.s32.totalorder %v283, %v467
    %vm624 = vcmp.eq.s32.totalorder %v283, %v470
    %vm625 = vcmp.eq.s32.totalorder %v283, %v473
    %vm626 = vcmp.eq.s32.totalorder %v283, %v476
    %vm627 = vcmp.eq.s32.totalorder %v283, %v479
    %vm628 = vcmp.eq.s32.totalorder %v283, %v482
    %vm629 = vcmp.eq.s32.totalorder %v283, %v485
    %vm630 = vcmp.eq.s32.totalorder %v283, %v488
    %vm631 = vcmp.eq.s32.totalorder %v283, %v491
    %vm632 = vcmp.eq.s32.totalorder %v283, %v494
    %vm633 = vcmp.eq.s32.totalorder %v283, %v497
    %vm634 = vcmp.eq.s32.totalorder %v283, %v500
    %vm635 = vcmp.eq.s32.totalorder %v283, %v503
    %vm636 = vcmp.eq.s32.totalorder %v283, %v506
    %vm637 = vcmp.eq.s32.totalorder %v283, %v509
    %vm638 = vcmp.eq.s32.totalorder %v283, %v512
    %vm639 = vcmp.eq.s32.totalorder %v283, %v515
    %vm640 = vcmp.eq.s32.totalorder %v283, %v518
    %vm641 = vcmp.eq.s32.totalorder %v283, %v521
    %vm642 = vcmp.eq.s32.totalorder %v283, %v524
    %vm643 = vcmp.eq.s32.totalorder %v283, %v527
    %vm644 = vcmp.eq.s32.totalorder %v283, %v530
    %vm645 = vcmp.eq.s32.totalorder %v283, %v533
    %vm646 = vcmp.eq.s32.totalorder %v283, %v536
    %vm647 = vcmp.eq.s32.totalorder %v283, %v539
    %vm648 = vcmp.eq.s32.totalorder %v283, %v542
    %vm649 = vcmp.eq.s32.totalorder %v283, %v545
    %vm650 = vcmp.eq.s32.totalorder %v283, %v548
    %vm651 = vcmp.eq.s32.totalorder %v283, %v551
    %vm652 = vcmp.eq.s32.totalorder %v283, %v554
    %vm653 = vcmp.eq.s32.totalorder %v283, %v557
    %vm654 = vcmp.eq.s32.totalorder %v283, %v560
    %vm655 = vcmp.eq.s32.totalorder %v283, %v563
    %vm656 = vcmp.eq.s32.totalorder %v283, %v566
    %vm657 = vcmp.eq.s32.totalorder %v283, %v569
    %vm658 = vcmp.eq.s32.totalorder %v283, %v572
    %vm659 = vcmp.eq.s32.totalorder %v283, %v575
    %vm660 = vcmp.eq.s32.totalorder %v283, %v578
    %vm661 = vcmp.eq.s32.totalorder %v283, %v581
    %vm662 = vcmp.eq.s32.totalorder %v283, %v584
    %vm663 = vcmp.eq.s32.totalorder %v283, %v587
    %vm664 = vcmp.eq.s32.totalorder %v283, %v590
    %vm665 = vcmp.eq.s32.totalorder %v283, %v593
    %vm666 = vcmp.eq.s32.totalorder %v283, %v596
    %vm667 = vcmp.eq.s32.totalorder %v283, %v599
    %vm668 = vcmp.eq.s32.totalorder %v283, %v602
    %vm669 = vcmp.eq.s32.totalorder %v283, %v605
    %vm670 = vcmp.lt.s32.totalorder %v350, 32
    %vm671 = vcmp.lt.s32.totalorder %v351, 32
    %vm672 = vcmp.lt.s32.totalorder %v352, 32
    %vm673 = vcmp.lt.s32.totalorder %v353, 32
    %vm674 = vcmp.lt.s32.totalorder %v354, 32
    %vm675 = vcmp.lt.s32.totalorder %v355, 32
    %vm676 = vcmp.lt.s32.totalorder %v356, 32
    %vm677 = vcmp.lt.s32.totalorder %v357, 32
    %vm678 = vcmp.lt.s32.totalorder %v358, 32
    %vm679 = vcmp.lt.s32.totalorder %v359, 32
    %vm680 = vcmp.lt.s32.totalorder %v360, 32
    %vm681 = vcmp.lt.s32.totalorder %v361, 32
    %vm682 = vcmp.lt.s32.totalorder %v362, 32
    %vm683 = vcmp.lt.s32.totalorder %v363, 32
    %vm684 = vcmp.lt.s32.totalorder %v364, 32
    %vm685 = vcmp.lt.s32.totalorder %v365, 32
    %vm686 = vcmp.lt.s32.totalorder %v366, 32
    %vm687 = vcmp.lt.s32.totalorder %v367, 32
    %vm688 = vcmp.lt.s32.totalorder %v368, 32
    %vm689 = vcmp.lt.s32.totalorder %v369, 32
    %vm690 = vcmp.lt.s32.totalorder %v370, 32
    %vm691 = vcmp.lt.s32.totalorder %v371, 32
    %vm692 = vcmp.lt.s32.totalorder %v372, 32
    %vm693 = vcmp.lt.s32.totalorder %v373, 32
    %vm694 = vcmp.lt.s32.totalorder %v374, 32
    %vm695 = vcmp.lt.s32.totalorder %v375, 32
    %vm696 = vcmp.lt.s32.totalorder %v376, 32
    %vm697 = vcmp.lt.s32.totalorder %v377, 32
    %vm698 = vcmp.lt.s32.totalorder %v378, 32
    %vm699 = vcmp.lt.s32.totalorder %v379, 32
    %vm700 = vcmp.lt.s32.totalorder %v380, 32
    %vm701 = vcmp.lt.s32.totalorder %v381, 32
    %vm702 = vcmp.lt.s32.totalorder %v382, 32
    %vm703 = vcmp.lt.s32.totalorder %v383, 32
    %vm704 = vcmp.lt.s32.totalorder %v384, 32
    %vm705 = vcmp.lt.s32.totalorder %v385, 32
    %vm706 = vcmp.lt.s32.totalorder %v386, 32
    %vm707 = vcmp.lt.s32.totalorder %v387, 32
    %vm708 = vcmp.lt.s32.totalorder %v388, 32
    %vm709 = vcmp.lt.s32.totalorder %v389, 32
    %vm710 = vcmp.lt.s32.totalorder %v390, 32
    %vm711 = vcmp.lt.s32.totalorder %v391, 32
    %vm712 = vcmp.lt.s32.totalorder %v392, 32
    %vm713 = vcmp.lt.s32.totalorder %v393, 32
    %vm714 = vcmp.lt.s32.totalorder %v394, 32
    %vm715 = vcmp.lt.s32.totalorder %v395, 32
    %vm716 = vcmp.lt.s32.totalorder %v396, 32
    %vm717 = vcmp.lt.s32.totalorder %v397, 32
    %vm718 = vcmp.lt.s32.totalorder %v398, 32
    %vm719 = vcmp.lt.s32.totalorder %v399, 32
    %vm720 = vcmp.lt.s32.totalorder %v400, 32
    %vm721 = vcmp.lt.s32.totalorder %v401, 32
    %vm722 = vcmp.lt.s32.totalorder %v402, 32
    %vm723 = vcmp.lt.s32.totalorder %v403, 32
    %vm724 = vcmp.lt.s32.totalorder %v404, 32
    %vm725 = vcmp.lt.s32.totalorder %v405, 32
    %vm726 = vcmp.lt.s32.totalorder %v406, 32
    %vm727 = vcmp.lt.s32.totalorder %v407, 32
    %vm728 = vcmp.lt.s32.totalorder %v408, 32
    %vm729 = vcmp.lt.s32.totalorder %v409, 32
    %vm730 = vcmp.lt.s32.totalorder %v410, 32
    %vm731 = vcmp.lt.s32.totalorder %v411, 32
    %vm732 = vcmp.lt.s32.totalorder %v412, 32
    %vm733 = vcmp.lt.s32.totalorder %v413, 32
    %v734 = vsel %vm670, 1, 0
    %v735 = vsel %vm671, 1, 0
    %v736 = vsel %vm672, 1, 0
    %v737 = vsel %vm673, 1, 0
    %v738 = vsel %vm674, 1, 0
    %v739 = vsel %vm675, 1, 0
    %v740 = vsel %vm676, 1, 0
    %v741 = vsel %vm677, 1, 0
    %v742 = vsel %vm678, 1, 0
    %v743 = vsel %vm679, 1, 0
    %v744 = vsel %vm680, 1, 0
    %v745 = vsel %vm681, 1, 0
    %v746 = vsel %vm682, 1, 0
    %v747 = vsel %vm683, 1, 0
    %v748 = vsel %vm684, 1, 0
    %v749 = vsel %vm685, 1, 0
    %v750 = vsel %vm686, 1, 0
    %v751 = vsel %vm687, 1, 0
    %v752 = vsel %vm688, 1, 0
    %v753 = vsel %vm689, 1, 0
    %v754 = vsel %vm690, 1, 0
    %v755 = vsel %vm691, 1, 0
    %v756 = vsel %vm692, 1, 0
    %v757 = vsel %vm693, 1, 0
    %v758 = vsel %vm694, 1, 0
    %v759 = vsel %vm695, 1, 0
    %v760 = vsel %vm696, 1, 0
    %v761 = vsel %vm697, 1, 0
    %v762 = vsel %vm698, 1, 0
    %v763 = vsel %vm699, 1, 0
    %v764 = vsel %vm700, 1, 0
    %v765 = vsel %vm701, 1, 0
    %v766 = vsel %vm702, 1, 0
    %v767 = vsel %vm703, 1, 0
    %v768 = vsel %vm704, 1, 0
    %v769 = vsel %vm705, 1, 0
    %v770 = vsel %vm706, 1, 0
    %v771 = vsel %vm707, 1, 0
    %v772 = vsel %vm708, 1, 0
    %v773 = vsel %vm709, 1, 0
    %v774 = vsel %vm710, 1, 0
    %v775 = vsel %vm711, 1, 0
    %v776 = vsel %vm712, 1, 0
    %v777 = vsel %vm713, 1, 0
    %v778 = vsel %vm714, 1, 0
    %v779 = vsel %vm715, 1, 0
    %v780 = vsel %vm716, 1, 0
    %v781 = vsel %vm717, 1, 0
    %v782 = vsel %vm718, 1, 0
    %v783 = vsel %vm719, 1, 0
    %v784 = vsel %vm720, 1, 0
    %v785 = vsel %vm721, 1, 0
    %v786 = vsel %vm722, 1, 0
    %v787 = vsel %vm723, 1, 0
    %v788 = vsel %vm724, 1, 0
    %v789 = vsel %vm725, 1, 0
    %v790 = vsel %vm726, 1, 0
    %v791 = vsel %vm727, 1, 0
    %v792 = vsel %vm728, 1, 0
    %v793 = vsel %vm729, 1, 0
    %v794 = vsel %vm730, 1, 0
    %v795 = vsel %vm731, 1, 0
    %v796 = vsel %vm732, 1, 0
    %v797 = vsel %vm733, 1, 0
    %vm798 = vcmp.eq.s32.totalorder %v734, 1
    %vm799 = vcmp.eq.s32.totalorder %v735, 1
    %vm800 = vcmp.eq.s32.totalorder %v736, 1
    %vm801 = vcmp.eq.s32.totalorder %v737, 1
    %vm802 = vcmp.eq.s32.totalorder %v738, 1
    %vm803 = vcmp.eq.s32.totalorder %v739, 1
    %vm804 = vcmp.eq.s32.totalorder %v740, 1
    %vm805 = vcmp.eq.s32.totalorder %v741, 1
    %vm806 = vcmp.eq.s32.totalorder %v742, 1
    %vm807 = vcmp.eq.s32.totalorder %v743, 1
    %vm808 = vcmp.eq.s32.totalorder %v744, 1
    %vm809 = vcmp.eq.s32.totalorder %v745, 1
    %vm810 = vcmp.eq.s32.totalorder %v746, 1
    %vm811 = vcmp.eq.s32.totalorder %v747, 1
    %vm812 = vcmp.eq.s32.totalorder %v748, 1
    %vm813 = vcmp.eq.s32.totalorder %v749, 1
    %vm814 = vcmp.eq.s32.totalorder %v750, 1
    %vm815 = vcmp.eq.s32.totalorder %v751, 1
    %vm816 = vcmp.eq.s32.totalorder %v752, 1
    %vm817 = vcmp.eq.s32.totalorder %v753, 1
    %vm818 = vcmp.eq.s32.totalorder %v754, 1
    %vm819 = vcmp.eq.s32.totalorder %v755, 1
    %vm820 = vcmp.eq.s32.totalorder %v756, 1
    %vm821 = vcmp.eq.s32.totalorder %v757, 1
    %vm822 = vcmp.eq.s32.totalorder %v758, 1
    %vm823 = vcmp.eq.s32.totalorder %v759, 1
    %vm824 = vcmp.eq.s32.totalorder %v760, 1
    %vm825 = vcmp.eq.s32.totalorder %v761, 1
    %vm826 = vcmp.eq.s32.totalorder %v762, 1
    %vm827 = vcmp.eq.s32.totalorder %v763, 1
    %vm828 = vcmp.eq.s32.totalorder %v764, 1
    %vm829 = vcmp.eq.s32.totalorder %v765, 1
    %vm830 = vcmp.eq.s32.totalorder %v766, 1
    %vm831 = vcmp.eq.s32.totalorder %v767, 1
    %vm832 = vcmp.eq.s32.totalorder %v768, 1
    %vm833 = vcmp.eq.s32.totalorder %v769, 1
    %vm834 = vcmp.eq.s32.totalorder %v770, 1
    %vm835 = vcmp.eq.s32.totalorder %v771, 1
    %vm836 = vcmp.eq.s32.totalorder %v772, 1
    %vm837 = vcmp.eq.s32.totalorder %v773, 1
    %vm838 = vcmp.eq.s32.totalorder %v774, 1
    %vm839 = vcmp.eq.s32.totalorder %v775, 1
    %vm840 = vcmp.eq.s32.totalorder %v776, 1
    %vm841 = vcmp.eq.s32.totalorder %v777, 1
    %vm842 = vcmp.eq.s32.totalorder %v778, 1
    %vm843 = vcmp.eq.s32.totalorder %v779, 1
    %vm844 = vcmp.eq.s32.totalorder %v780, 1
    %vm845 = vcmp.eq.s32.totalorder %v781, 1
    %vm846 = vcmp.eq.s32.totalorder %v782, 1
    %vm847 = vcmp.eq.s32.totalorder %v783, 1
    %vm848 = vcmp.eq.s32.totalorder %v784, 1
    %vm849 = vcmp.eq.s32.totalorder %v785, 1
    %vm850 = vcmp.eq.s32.totalorder %v786, 1
    %vm851 = vcmp.eq.s32.totalorder %v787, 1
    %vm852 = vcmp.eq.s32.totalorder %v788, 1
    %vm853 = vcmp.eq.s32.totalorder %v789, 1
    %vm854 = vcmp.eq.s32.totalorder %v790, 1
    %vm855 = vcmp.eq.s32.totalorder %v791, 1
    %vm856 = vcmp.eq.s32.totalorder %v792, 1
    %vm857 = vcmp.eq.s32.totalorder %v793, 1
    %vm858 = vcmp.eq.s32.totalorder %v794, 1
    %vm859 = vcmp.eq.s32.totalorder %v795, 1
    %vm860 = vcmp.eq.s32.totalorder %v796, 1
    %vm861 = vcmp.eq.s32.totalorder %v797, 1
    %vm862 = vmand %vm606, %vm798
    %vm863 = vmand %vm607, %vm799
    %vm864 = vmand %vm608, %vm800
    %vm865 = vmand %vm609, %vm801
    %vm866 = vmand %vm610, %vm802
    %vm867 = vmand %vm611, %vm803
    %vm868 = vmand %vm612, %vm804
    %vm869 = vmand %vm613, %vm805
    %vm870 = vmand %vm614, %vm806
    %vm871 = vmand %vm615, %vm807
    %vm872 = vmand %vm616, %vm808
    %vm873 = vmand %vm617, %vm809
    %vm874 = vmand %vm618, %vm810
    %vm875 = vmand %vm619, %vm811
    %vm876 = vmand %vm620, %vm812
    %vm877 = vmand %vm621, %vm813
    %vm878 = vmand %vm622, %vm814
    %vm879 = vmand %vm623, %vm815
    %vm880 = vmand %vm624, %vm816
    %vm881 = vmand %vm625, %vm817
    %vm882 = vmand %vm626, %vm818
    %vm883 = vmand %vm627, %vm819
    %vm884 = vmand %vm628, %vm820
    %vm885 = vmand %vm629, %vm821
    %vm886 = vmand %vm630, %vm822
    %vm887 = vmand %vm631, %vm823
    %vm888 = vmand %vm632, %vm824
    %vm889 = vmand %vm633, %vm825
    %vm890 = vmand %vm634, %vm826
    %vm891 = vmand %vm635, %vm827
    %vm892 = vmand %vm636, %vm828
    %vm893 = vmand %vm637, %vm829
    %vm894 = vmand %vm638, %vm830
    %vm895 = vmand %vm639, %vm831
    %vm896 = vmand %vm640, %vm832
    %vm897 = vmand %vm641, %vm833
    %vm898 = vmand %vm642, %vm834
    %vm899 = vmand %vm643, %vm835
    %vm900 = vmand %vm644, %vm836
    %vm901 = vmand %vm645, %vm837
    %vm902 = vmand %vm646, %vm838
    %vm903 = vmand %vm647, %vm839
    %vm904 = vmand %vm648, %vm840
    %vm905 = vmand %vm649, %vm841
    %vm906 = vmand %vm650, %vm842
    %vm907 = vmand %vm651, %vm843
    %vm908 = vmand %vm652, %vm844
    %vm909 = vmand %vm653, %vm845
    %vm910 = vmand %vm654, %vm846
    %vm911 = vmand %vm655, %vm847
    %vm912 = vmand %vm656, %vm848
    %vm913 = vmand %vm657, %vm849
    %vm914 = vmand %vm658, %vm850
    %vm915 = vmand %vm659, %vm851
    %vm916 = vmand %vm660, %vm852
    %vm917 = vmand %vm661, %vm853
    %vm918 = vmand %vm662, %vm854
    %vm919 = vmand %vm663, %vm855
    %vm920 = vmand %vm664, %vm856
    %vm921 = vmand %vm665, %vm857
    %vm922 = vmand %vm666, %vm858
    %vm923 = vmand %vm667, %vm859
    %vm924 = vmand %vm668, %vm860
    %vm925 = vmand %vm669, %vm861
    %v926 = vsel %vm862, 1, 0
    %v927 = vsel %vm863, 1, 0
    %v928 = vsel %vm864, 1, 0
    %v929 = vsel %vm865, 1, 0
    %v930 = vsel %vm866, 1, 0
    %v931 = vsel %vm867, 1, 0
    %v932 = vsel %vm868, 1, 0
    %v933 = vsel %vm869, 1, 0
    %v934 = vsel %vm870, 1, 0
    %v935 = vsel %vm871, 1, 0
    %v936 = vsel %vm872, 1, 0
    %v937 = vsel %vm873, 1, 0
    %v938 = vsel %vm874, 1, 0
    %v939 = vsel %vm875, 1, 0
    %v940 = vsel %vm876, 1, 0
    %v941 = vsel %vm877, 1, 0
    %v942 = vsel %vm878, 1, 0
    %v943 = vsel %vm879, 1, 0
    %v944 = vsel %vm880, 1, 0
    %v945 = vsel %vm881, 1, 0
    %v946 = vsel %vm882, 1, 0
    %v947 = vsel %vm883, 1, 0
    %v948 = vsel %vm884, 1, 0
    %v949 = vsel %vm885, 1, 0
    %v950 = vsel %vm886, 1, 0
    %v951 = vsel %vm887, 1, 0
    %v952 = vsel %vm888, 1, 0
    %v953 = vsel %vm889, 1, 0
    %v954 = vsel %vm890, 1, 0
    %v955 = vsel %vm891, 1, 0
    %v956 = vsel %vm892, 1, 0
    %v957 = vsel %vm893, 1, 0
    %v958 = vsel %vm894, 1, 0
    %v959 = vsel %vm895, 1, 0
    %v960 = vsel %vm896, 1, 0
    %v961 = vsel %vm897, 1, 0
    %v962 = vsel %vm898, 1, 0
    %v963 = vsel %vm899, 1, 0
    %v964 = vsel %vm900, 1, 0
    %v965 = vsel %vm901, 1, 0
    %v966 = vsel %vm902, 1, 0
    %v967 = vsel %vm903, 1, 0
    %v968 = vsel %vm904, 1, 0
    %v969 = vsel %vm905, 1, 0
    %v970 = vsel %vm906, 1, 0
    %v971 = vsel %vm907, 1, 0
    %v972 = vsel %vm908, 1, 0
    %v973 = vsel %vm909, 1, 0
    %v974 = vsel %vm910, 1, 0
    %v975 = vsel %vm911, 1, 0
    %v976 = vsel %vm912, 1, 0
    %v977 = vsel %vm913, 1, 0
    %v978 = vsel %vm914, 1, 0
    %v979 = vsel %vm915, 1, 0
    %v980 = vsel %vm916, 1, 0
    %v981 = vsel %vm917, 1, 0
    %v982 = vsel %vm918, 1, 0
    %v983 = vsel %vm919, 1, 0
    %v984 = vsel %vm920, 1, 0
    %v985 = vsel %vm921, 1, 0
    %v986 = vsel %vm922, 1, 0
    %v987 = vsel %vm923, 1, 0
    %v988 = vsel %vm924, 1, 0
    %v989 = vsel %vm925, 1, 0
    %v990 = vcvt.s32.f32 %v926
    %v991 = vcvt.s32.f32 %v927
    %v992 = vcvt.s32.f32 %v928
    %v993 = vcvt.s32.f32 %v929
    %v994 = vcvt.s32.f32 %v930
    %v995 = vcvt.s32.f32 %v931
    %v996 = vcvt.s32.f32 %v932
    %v997 = vcvt.s32.f32 %v933
    %v998 = vcvt.s32.f32 %v934
    %v999 = vcvt.s32.f32 %v935
    %v1000 = vcvt.s32.f32 %v936
    %v1001 = vcvt.s32.f32 %v937
    %v1002 = vcvt.s32.f32 %v938
    %v1003 = vcvt.s32.f32 %v939
    %v1004 = vcvt.s32.f32 %v940
    %v1005 = vcvt.s32.f32 %v941
    %v1006 = vcvt.s32.f32 %v942
    %v1007 = vcvt.s32.f32 %v943
    %v1008 = vcvt.s32.f32 %v944
    %v1009 = vcvt.s32.f32 %v945
    %v1010 = vcvt.s32.f32 %v946
    %v1011 = vcvt.s32.f32 %v947
    %v1012 = vcvt.s32.f32 %v948
    %v1013 = vcvt.s32.f32 %v949
    %v1014 = vcvt.s32.f32 %v950
    %v1015 = vcvt.s32.f32 %v951
    %v1016 = vcvt.s32.f32 %v952
    %v1017 = vcvt.s32.f32 %v953
    %v1018 = vcvt.s32.f32 %v954
    %v1019 = vcvt.s32.f32 %v955
    %v1020 = vcvt.s32.f32 %v956
    %v1021 = vcvt.s32.f32 %v957
    %v1022 = vcvt.s32.f32 %v958
    %v1023 = vcvt.s32.f32 %v959
    %v1024 = vcvt.s32.f32 %v960
    %v1025 = vcvt.s32.f32 %v961
    %v1026 = vcvt.s32.f32 %v962
    %v1027 = vcvt.s32.f32 %v963
    %v1028 = vcvt.s32.f32 %v964
    %v1029 = vcvt.s32.f32 %v965
    %v1030 = vcvt.s32.f32 %v966
    %v1031 = vcvt.s32.f32 %v967
    %v1032 = vcvt.s32.f32 %v968
    %v1033 = vcvt.s32.f32 %v969
    %v1034 = vcvt.s32.f32 %v970
    %v1035 = vcvt.s32.f32 %v971
    %v1036 = vcvt.s32.f32 %v972
    %v1037 = vcvt.s32.f32 %v973
    %v1038 = vcvt.s32.f32 %v974
    %v1039 = vcvt.s32.f32 %v975
    %v1040 = vcvt.s32.f32 %v976
    %v1041 = vcvt.s32.f32 %v977
    %v1042 = vcvt.s32.f32 %v978
    %v1043 = vcvt.s32.f32 %v979
    %v1044 = vcvt.s32.f32 %v980
    %v1045 = vcvt.s32.f32 %v981
    %v1046 = vcvt.s32.f32 %v982
    %v1047 = vcvt.s32.f32 %v983
    %v1048 = vcvt.s32.f32 %v984
    %v1049 = vcvt.s32.f32 %v985
    %v1050 = vcvt.s32.f32 %v986
    %v1051 = vcvt.s32.f32 %v987
    %v1052 = vcvt.s32.f32 %v988
    %v1053 = vcvt.s32.f32 %v989
    %v1054 = vld [vmem:[#allocation3] sm:$0xff]
    %1055 = vmatprep.subr.mxu0 0.0
    %1056 = vmatpush1.msra.mxu0 %v1005
    %1057 = vmatprep.subr.mxu0 0.0
    %1058 = vmatpush1.msra.mxu0 %v1004
    %1059 = vmatprep.subr.mxu0 0.0
    %1060 = vmatpush1.msra.mxu0 %v1003
    %1061 = vmatprep.subr.mxu0 0.0
    %1062 = vmatpush1.msra.mxu0 %v1002
    %1063 = vmatprep.subr.mxu0 0.0
    %1064 = vmatpush1.msra.mxu0 %v1001
    %1065 = vmatprep.subr.mxu0 0.0
    %1066 = vmatpush1.msra.mxu0 %v1000
    %1067 = vmatprep.subr.mxu0 0.0
    %1068 = vmatpush1.msra.mxu0 %v999
    %1069 = vmatprep.subr.mxu0 0.0
    %1070 = vmatpush1.msra.mxu0 %v998
    %1071 = vmatprep.subr.mxu0 0.0
    %1072 = vmatpush1.msra.mxu0 %v997
    %1073 = vmatprep.subr.mxu0 0.0
    %1074 = vmatpush1.msra.mxu0 %v996
    %1075 = vmatprep.subr.mxu0 0.0
    %1076 = vmatpush1.msra.mxu0 %v995
    %1077 = vmatprep.subr.mxu0 0.0
    %1078 = vmatpush1.msra.mxu0 %v994
    %1079 = vmatprep.subr.mxu0 0.0
    %1080 = vmatpush1.msra.mxu0 %v993
    %1081 = vmatprep.subr.mxu0 0.0
    %1082 = vmatpush1.msra.mxu0 %v992
    %1083 = vmatprep.subr.mxu0 0.0
    %1084 = vmatpush1.msra.mxu0 %v991
    %1085 = vmatprep.subr.mxu0 0.0
    %1086 = vmatpush1.msra.mxu0 %v990
    %1087 = vmatprep.subr.mxu0 0.0
    %1088 = vmatpush2.msra.mxu0 %v1021
    %1089 = vmatprep.subr.mxu0 0.0
    %1090 = vmatpush2.msra.mxu0 %v1020
    %1091 = vmatprep.subr.mxu0 0.0
    %1092 = vmatpush2.msra.mxu0 %v1019
    %1093 = vmatprep.subr.mxu0 0.0
    %1094 = vmatpush2.msra.mxu0 %v1018
    %1095 = vmatprep.subr.mxu0 0.0
    %1096 = vmatpush2.msra.mxu0 %v1017
    %1097 = vmatprep.subr.mxu0 0.0
    %1098 = vmatpush2.msra.mxu0 %v1016
    %1099 = vmatprep.subr.mxu0 0.0
    %1100 = vmatpush2.msra.mxu0 %v1015
    %1101 = vmatprep.subr.mxu0 0.0
    %1102 = vmatpush2.msra.mxu0 %v1014
    %1103 = vmatprep.subr.mxu0 0.0
    %1104 = vmatpush2.msra.mxu0 %v1013
    %1105 = vmatprep.subr.mxu0 0.0
    %1106 = vmatpush2.msra.mxu0 %v1012
    %1107 = vmatprep.subr.mxu0 0.0
    %1108 = vmatpush2.msra.mxu0 %v1011
    %1109 = vmatprep.subr.mxu0 0.0
    %1110 = vmatpush2.msra.mxu0 %v1010
    %1111 = vmatprep.subr.mxu0 0.0
    %1112 = vmatpush2.msra.mxu0 %v1009
    %1113 = vmatprep.subr.mxu0 0.0
    %1114 = vmatpush2.msra.mxu0 %v1008
    %1115 = vmatprep.subr.mxu0 0.0
    %1116 = vmatpush2.msra.mxu0 %v1007
    %1117 = vmatprep.subr.mxu0 0.0
    %1118 = vmatpush2.msra.mxu0 %v1006
    %1119 = vmatprep.mubr.f32.mxu0 %v145
    %1120 = vmatmul.mubr.f32.gmra.mxu0 %v143
    %v1121 = vpop.f32.mrf.mxu0
    %v1122 = vadd.f32 0.0, %v1121
    %v1123 = vpop.f32.mrf.mxu0
    %1124 = vdwg.mxu0
    %1125 = vmatprep.subr.mxu0 0.0
    %1126 = vmatpush1.msra.mxu0 %v1037
    %1127 = vmatprep.subr.mxu0 0.0
    %1128 = vmatpush1.msra.mxu0 %v1036
    %1129 = vmatprep.subr.mxu0 0.0
    %1130 = vmatpush1.msra.mxu0 %v1035
    %1131 = vmatprep.subr.mxu0 0.0
    %1132 = vmatpush1.msra.mxu0 %v1034
    %1133 = vmatprep.subr.mxu0 0.0
    %1134 = vmatpush1.msra.mxu0 %v1033
    %1135 = vmatprep.subr.mxu0 0.0
    %1136 = vmatpush1.msra.mxu0 %v1032
    %1137 = vmatprep.subr.mxu0 0.0
    %1138 = vmatpush1.msra.mxu0 %v1031
    %1139 = vmatprep.subr.mxu0 0.0
    %1140 = vmatpush1.msra.mxu0 %v1030
    %1141 = vmatprep.subr.mxu0 0.0
    %1142 = vmatpush1.msra.mxu0 %v1029
    %1143 = vmatprep.subr.mxu0 0.0
    %1144 = vmatpush1.msra.mxu0 %v1028
    %1145 = vmatprep.subr.mxu0 0.0
    %1146 = vmatpush1.msra.mxu0 %v1027
    %1147 = vmatprep.subr.mxu0 0.0
    %1148 = vmatpush1.msra.mxu0 %v1026
    %1149 = vmatprep.subr.mxu0 0.0
    %1150 = vmatpush1.msra.mxu0 %v1025
    %1151 = vmatprep.subr.mxu0 0.0
    %1152 = vmatpush1.msra.mxu0 %v1024
    %1153 = vmatprep.subr.mxu0 0.0
    %1154 = vmatpush1.msra.mxu0 %v1023
    %1155 = vmatprep.subr.mxu0 0.0
    %1156 = vmatpush1.msra.mxu0 %v1022
    %1157 = vmatprep.subr.mxu0 0.0
    %1158 = vmatpush2.msra.mxu0 %v1053
    %1159 = vmatprep.subr.mxu0 0.0
    %1160 = vmatpush2.msra.mxu0 %v1052
    %1161 = vmatprep.subr.mxu0 0.0
    %1162 = vmatpush2.msra.mxu0 %v1051
    %1163 = vmatprep.subr.mxu0 0.0
    %1164 = vmatpush2.msra.mxu0 %v1050
    %1165 = vmatprep.subr.mxu0 0.0
    %1166 = vmatpush2.msra.mxu0 %v1049
    %1167 = vmatprep.subr.mxu0 0.0
    %1168 = vmatpush2.msra.mxu0 %v1048
    %1169 = vmatprep.subr.mxu0 0.0
    %1170 = vmatpush2.msra.mxu0 %v1047
    %1171 = vmatprep.subr.mxu0 0.0
    %1172 = vmatpush2.msra.mxu0 %v1046
    %1173 = vmatprep.subr.mxu0 0.0
    %1174 = vmatpush2.msra.mxu0 %v1045
    %1175 = vmatprep.subr.mxu0 0.0
    %1176 = vmatpush2.msra.mxu0 %v1044
    %1177 = vmatprep.subr.mxu0 0.0
    %1178 = vmatpush2.msra.mxu0 %v1043
    %1179 = vmatprep.subr.mxu0 0.0
    %1180 = vmatpush2.msra.mxu0 %v1042
    %1181 = vmatprep.subr.mxu0 0.0
    %1182 = vmatpush2.msra.mxu0 %v1041
    %1183 = vmatprep.subr.mxu0 0.0
    %1184 = vmatpush2.msra.mxu0 %v1040
    %1185 = vmatprep.subr.mxu0 0.0
    %1186 = vmatpush2.msra.mxu0 %v1039
    %1187 = vmatprep.subr.mxu0 0.0
    %1188 = vmatpush2.msra.mxu0 %v1038
    %1189 = vmatprep.mubr.f32.mxu0 %v216
    %1190 = vmatmul.mubr.f32.gmra.mxu0 %v214
    %v1191 = vpop.f32.mrf.mxu0
    %v1192 = vadd.f32 %v1122, %v1191
    %v1193 = vpop.f32.mrf.mxu0
    %1194 = vdwg.mxu0
    %v1195 = vadd.f32 %v1054, %v1192
    %vm1196 = vcmask 130048
    %1197 = vst.msk [vmem:[#allocation3] sm:$0xff] %vm1196, %v1195
    %v1198 = vld [vmem:[#allocation2] sm:$0x1]
    %v1199 = vsel %vm1196, %v990, 0.0
    %v1200 = vsel %vm1196, %v991, 0.0
    %v1201 = vadd.f32 %v1199, %v1200
    %v1202 = vsel %vm1196, %v992, 0.0
    %v1203 = vadd.f32 %v1201, %v1202
    %v1204 = vsel %vm1196, %v993, 0.0
    %v1205 = vadd.f32 %v1203, %v1204
    %v1206 = vsel %vm1196, %v994, 0.0
    %v1207 = vadd.f32 %v1205, %v1206
    %v1208 = vsel %vm1196, %v995, 0.0
    %v1209 = vadd.f32 %v1207, %v1208
    %v1210 = vsel %vm1196, %v996, 0.0
    %v1211 = vadd.f32 %v1209, %v1210
    %v1212 = vsel %vm1196, %v997, 0.0
    %v1213 = vadd.f32 %v1211, %v1212
    %v1214 = vsel %vm1196, %v998, 0.0
    %v1215 = vadd.f32 %v1213, %v1214
    %v1216 = vsel %vm1196, %v999, 0.0
    %v1217 = vadd.f32 %v1215, %v1216
    %v1218 = vsel %vm1196, %v1000, 0.0
    %v1219 = vadd.f32 %v1217, %v1218
    %v1220 = vsel %vm1196, %v1001, 0.0
    %v1221 = vadd.f32 %v1219, %v1220
    %v1222 = vsel %vm1196, %v1002, 0.0
    %v1223 = vadd.f32 %v1221, %v1222
    %v1224 = vsel %vm1196, %v1003, 0.0
    %v1225 = vadd.f32 %v1223, %v1224
    %v1226 = vsel %vm1196, %v1004, 0.0
    %v1227 = vadd.f32 %v1225, %v1226
    %v1228 = vsel %vm1196, %v1005, 0.0
    %v1229 = vadd.f32 %v1227, %v1228
    %v1230 = vsel %vm1196, %v1006, 0.0
    %v1231 = vadd.f32 %v1229, %v1230
    %v1232 = vsel %vm1196, %v1007, 0.0
    %v1233 = vadd.f32 %v1231, %v1232
    %v1234 = vsel %vm1196, %v1008, 0.0
    %v1235 = vadd.f32 %v1233, %v1234
    %v1236 = vsel %vm1196, %v1009, 0.0
    %v1237 = vadd.f32 %v1235, %v1236
    %v1238 = vsel %vm1196, %v1010, 0.0
    %v1239 = vadd.f32 %v1237, %v1238
    %v1240 = vsel %vm1196, %v1011, 0.0
    %v1241 = vadd.f32 %v1239, %v1240
    %v1242 = vsel %vm1196, %v1012, 0.0
    %v1243 = vadd.f32 %v1241, %v1242
    %v1244 = vsel %vm1196, %v1013, 0.0
    %v1245 = vadd.f32 %v1243, %v1244
    %v1246 = vsel %vm1196, %v1014, 0.0
    %v1247 = vadd.f32 %v1245, %v1246
    %v1248 = vsel %vm1196, %v1015, 0.0
    %v1249 = vadd.f32 %v1247, %v1248
    %v1250 = vsel %vm1196, %v1016, 0.0
    %v1251 = vadd.f32 %v1249, %v1250
    %v1252 = vsel %vm1196, %v1017, 0.0
    %v1253 = vadd.f32 %v1251, %v1252
    %v1254 = vsel %vm1196, %v1018, 0.0
    %v1255 = vadd.f32 %v1253, %v1254
    %v1256 = vsel %vm1196, %v1019, 0.0
    %v1257 = vadd.f32 %v1255, %v1256
    %v1258 = vsel %vm1196, %v1020, 0.0
    %v1259 = vadd.f32 %v1257, %v1258
    %v1260 = vsel %vm1196, %v1021, 0.0
    %v1261 = vadd.f32 %v1259, %v1260
    %v1262 = vsel %vm1196, %v1022, 0.0
    %v1263 = vadd.f32 %v1261, %v1262
    %v1264 = vsel %vm1196, %v1023, 0.0
    %v1265 = vadd.f32 %v1263, %v1264
    %v1266 = vsel %vm1196, %v1024, 0.0
    %v1267 = vadd.f32 %v1265, %v1266
    %v1268 = vsel %vm1196, %v1025, 0.0
    %v1269 = vadd.f32 %v1267, %v1268
    %v1270 = vsel %vm1196, %v1026, 0.0
    %v1271 = vadd.f32 %v1269, %v1270
    %v1272 = vsel %vm1196, %v1027, 0.0
    %v1273 = vadd.f32 %v1271, %v1272
    %v1274 = vsel %vm1196, %v1028, 0.0
    %v1275 = vadd.f32 %v1273, %v1274
    %v1276 = vsel %vm1196, %v1029, 0.0
    %v1277 = vadd.f32 %v1275, %v1276
    %v1278 = vsel %vm1196, %v1030, 0.0
    %v1279 = vadd.f32 %v1277, %v1278
    %v1280 = vsel %vm1196, %v1031, 0.0
    %v1281 = vadd.f32 %v1279, %v1280
    %v1282 = vsel %vm1196, %v1032, 0.0
    %v1283 = vadd.f32 %v1281, %v1282
    %v1284 = vsel %vm1196, %v1033, 0.0
    %v1285 = vadd.f32 %v1283, %v1284
    %v1286 = vsel %vm1196, %v1034, 0.0
    %v1287 = vadd.f32 %v1285, %v1286
    %v1288 = vsel %vm1196, %v1035, 0.0
    %v1289 = vadd.f32 %v1287, %v1288
    %v1290 = vsel %vm1196, %v1036, 0.0
    %v1291 = vadd.f32 %v1289, %v1290
    %v1292 = vsel %vm1196, %v1037, 0.0
    %v1293 = vadd.f32 %v1291, %v1292
    %v1294 = vsel %vm1196, %v1038, 0.0
    %v1295 = vadd.f32 %v1293, %v1294
    %v1296 = vsel %vm1196, %v1039, 0.0
    %v1297 = vadd.f32 %v1295, %v1296
    %v1298 = vsel %vm1196, %v1040, 0.0
    %v1299 = vadd.f32 %v1297, %v1298
    %v1300 = vsel %vm1196, %v1041, 0.0
    %v1301 = vadd.f32 %v1299, %v1300
    %v1302 = vsel %vm1196, %v1042, 0.0
    %v1303 = vadd.f32 %v1301, %v1302
    %v1304 = vsel %vm1196, %v1043, 0.0
    %v1305 = vadd.f32 %v1303, %v1304
    %v1306 = vsel %vm1196, %v1044, 0.0
    %v1307 = vadd.f32 %v1305, %v1306
    %v1308 = vsel %vm1196, %v1045, 0.0
    %v1309 = vadd.f32 %v1307, %v1308
    %v1310 = vsel %vm1196, %v1046, 0.0
    %v1311 = vadd.f32 %v1309, %v1310
    %v1312 = vsel %vm1196, %v1047, 0.0
    %v1313 = vadd.f32 %v1311, %v1312
    %v1314 = vsel %vm1196, %v1048, 0.0
    %v1315 = vadd.f32 %v1313, %v1314
    %v1316 = vsel %vm1196, %v1049, 0.0
    %v1317 = vadd.f32 %v1315, %v1316
    %v1318 = vsel %vm1196, %v1050, 0.0
    %v1319 = vadd.f32 %v1317, %v1318
    %v1320 = vsel %vm1196, %v1051, 0.0
    %v1321 = vadd.f32 %v1319, %v1320
    %v1322 = vsel %vm1196, %v1052, 0.0
    %v1323 = vadd.f32 %v1321, %v1322
    %v1324 = vsel %vm1196, %v1053, 0.0
    %v1325 = vadd.f32 %v1323, %v1324
    %v1326 = vrot.slane %v1325, 4
    %v1327 = vadd.f32 %v1325, %v1326
    %v1328 = vrot.slane %v1327, 2
    %v1329 = vadd.f32 %v1327, %v1328
    %v1330 = vrot.slane %v1329, 1
    %v1331 = vadd.f32 %v1329, %v1330
    %v1332 = vadd.f32 %v1198, %v1331
    %vm1333 = vcmask 122880
    %1334 = vst.msk [vmem:[#allocation2] sm:$0x1] %vm1333, %v1332
    // Predicated region
    $region22: #{sage_conv_with_edges.1} parent=1 // pred_check
      %p1335 = pneg %p19
    $region23: #{sage_conv_with_edges.1} parent=1 // pred_check_branch
      %1337 = sbr.rel (%p1335) target = $region25
    $region24: #{sage_conv_with_edges.1} parent=1 // pred_region
      %v1338 = vld [vmem:[#allocation3] sm:$0xff]
      %v1339 = vld [vmem:[#allocation2] sm:$0x1]
      %v1340 = vmax.f32 %v1339, 1.0
      %v1341 = vrcp.pop %v1340
      %v1343 = vlaneseq
      %v1344 = vshrl.u32 %v1343, 7
      %v1345 = vsub.s32 0, %v1344
      %v1346 = vrot.slane %v1341, %v1345
      %v1348 = vmul.f32 %v1338, %v1346
      %v1349 = vld [vmem:[%s3] sm:$0xff]
      %1351 = vset.pattern.permute.xlu0 0
      %1352 = vperm.xlu0 %1351, %v1349
      %v1353 = vpop.permute.xlu0 %1352
      %v1355 = vadd.f32 %v1348, %v1353
      %v1356 = vmul.f32 %v1355, %v1355
      %v1357 = vsel %vm1196, %v1356, 0.0
      %v1358 = vrot.slane %v1357, 4
      %v1359 = vadd.f32 %v1357, %v1358
      %v1360 = vrot.slane %v1359, 2
      %v1361 = vadd.f32 %v1359, %v1360
      %v1362 = vrot.slane %v1361, 1
      %v1363 = vadd.f32 %v1361, %v1362
      %v1364 = vmax.f32 %v1363, 1e-24
      %v1365 = vrsqrt.pop %v1364
      %v1366 = vmul.f32 %v1355, %v1365
      %1367 = vst.msk [vmem:[#allocation3] sm:$0xff] %vm1196, %v1366
    $region25: #{sage_conv_with_edges.1} parent=1 // pred_fallthru
      _
    // Predicated region
    $region26: #{sage_conv_with_edges.1} parent=1 // pred_check
      _
    $region27: #{sage_conv_with_edges.1} parent=1 // pred_check_branch
      %1369 = sbr.rel (0) target = $region29
    $region28: #{sage_conv_with_edges.1} parent=1 // pred_region
      %s1371 = ssub.s32 128, 128
      %1372 = vsyncadd [#allocation4], %s1371
      %s1374 = sshll.u32 [#allocation3], 4
      %s1375 = int_to_ptr.vmem [resolvable:$true] %s1374
      %1377 = dma.vmem_to_hbm [thread:$0]  %s1375, 128, %s4, [#allocation4]
    $region29: #{sage_conv_with_edges.1} parent=1 // pred_fallthru
      _
    // Predicated region
    $region30: #{sage_conv_with_edges.1} parent=1 // pred_check
      _
    $region31: #{sage_conv_with_edges.1} parent=1 // pred_check_branch
      %1379 = sbr.rel (0) target = $region33
    $region32: #{sage_conv_with_edges.1} parent=1 // pred_region
      %1380 = dma.done [#allocation4], 128
    $region33: #{sage_conv_with_edges.1} parent=1 // pred_fallthru
      _
    %1381 = vsyncpa [#allocation4], 1

</llo_original>
